<compile_context>
chip_gen: v7x
topology: tpu7x:2x2x1
jax: 0.10.0
libtpu: 0.0.40
codegen_flags: <defaults>
</compile_context>

<pallas_src>
import functools

import jax
import jax.numpy as jnp
import numpy as np
from jax import lax
from jax.experimental import pallas as pl
from jax.experimental.pallas import tpu as pltpu

NEG_SLOPE = 0.01   # torch LeakyReLU default
OUT_PAD = 128      # lane-dense output slab; logits live in columns 0 and 1


def _leaky_relu(x):
    return jnp.where(x >= 0, x, NEG_SLOPE * x)


# ----------------------------------------------------------------------------
# Single fused kernel: full NNConvNet forward (no grid, everything resident).
# ----------------------------------------------------------------------------
def _fused_kernel(src_ref, dst_ref, x_ref, eattr_ref,
                  w_in_ref, w_sq_ref, b_all_ref,
                  w_edge_ref, b_edge_ref,
                  w_out_ref, b_out_ref,
                  o_ref,
                  *, N, E, C, enc_depth, gnn_depth, dec_depth, out_pad):
    f32 = jnp.float32

    # ---- input projection ----------------------------------------------------
    h = (jnp.dot(x_ref[...], w_in_ref[...], preferred_element_type=f32)
         + b_all_ref[0:1, :])

    li = 0  # running index into the square-weight slab (biases offset by +1)

    # ---- encoder: (LeakyReLU -> Dropout(id) -> Linear) x enc_depth -----------
    for _ in range(enc_depth):
        w = w_sq_ref[li]                      # (C, C), static leading index
        b = b_all_ref[li + 1:li + 2, :]       # (1, C)
        h = jnp.dot(_leaky_relu(h), w, preferred_element_type=f32) + b
        li += 1

    # ---- edge NN: layer-invariant, computed ONCE, lane-0-aligned per-c blocks
    # ew_blocks[c][e, d] == leaky_relu(edge_attr @ W_edge + b_edge)[e, c*C + d]
    ew_blocks = []
    for c in range(C):
        ew_c = _leaky_relu(
            jnp.dot(eattr_ref[...], w_edge_ref[c], preferred_element_type=f32)
            + b_edge_ref[c])                  # (E, C)
        ew_blocks.append(ew_c)

    # ---- one-hot gather / scatter masks: layer-invariant, hoisted ------------
    src_oh = (src_ref[...] ==
              lax.broadcasted_iota(jnp.int32, (E, N), 1)).astype(f32)   # (E, N)
    dst_oh_t = (lax.broadcasted_iota(jnp.int32, (N, E), 0) ==
                dst_ref[...]).astype(f32)                                # (N, E)

    # ---- NNConv layers --------------------------------------------------------
    for _ in range(gnn_depth):
        h_act = _leaky_relu(h)   # TODO(synk): dropout == identity (eval)

        # gather on the MXU: xs[e] = h_act[src[e]]
        xs = jnp.dot(src_oh, h_act, preferred_element_type=f32)         # (E, C)

        # per-edge vec-mat: m[e, d] = sum_c xs[e, c] * ew[e, c*C + d]
        m = jnp.zeros((E, C), f32)
        for c in range(C):
            m = m + xs[:, c:c + 1] * ew_blocks[c]

        # scatter-add on the MXU: agg[n] = sum_{e: dst[e]==n} m[e]
        agg = jnp.dot(dst_oh_t, m, preferred_element_type=f32)          # (N, C)

        wroot = w_sq_ref[li]
        broot = b_all_ref[li + 1:li + 2, :]
        h = agg + jnp.dot(h_act, wroot, preferred_element_type=f32) + broot
        li += 1

    # ---- decoder --------------------------------------------------------------
    for _ in range(dec_depth):
        w = w_sq_ref[li]
        b = b_all_ref[li + 1:li + 2, :]
        h = jnp.dot(_leaky_relu(h), w, preferred_element_type=f32) + b
        li += 1

    # ---- head: z = h @ W_out + b_out ; log_softmax([0, z]) --------------------
    z = (jnp.dot(h, w_out_ref[...], preferred_element_type=f32)
         + b_out_ref[...])                                               # (N, 1)
    mpos = jnp.maximum(z, 0.0)
    lse = mpos + jnp.log(jnp.exp(-mpos) + jnp.exp(z - mpos))             # log(1+e^z)
    lane = lax.broadcasted_iota(jnp.int32, (N, out_pad), 1)
    padded = jnp.where(lane == 0, -lse, jnp.where(lane == 1, z - lse, 0.0))
    o_ref[...] = padded.astype(o_ref.dtype)


# ----------------------------------------------------------------------------
# Wrapper: pack parameter slabs + one pallas_call for the whole forward pass.
# ----------------------------------------------------------------------------
def nnconvnet_forward(params, x, edge_attr, src, dst, num_nodes, channel_width):
    N, C = num_nodes, channel_width
    E, ef = edge_attr.shape
    enc, gnn, dec = params['encoder'], params['gnn'], params['decoder']
    layers = enc + gnn + dec

    # Packed square-weight slab (L, C, C) and bias slab (1+L, C) with b_in row 0.
    w_sq = jnp.stack([w for (w, _) in layers], axis=0)
    b_all = jnp.concatenate([params['b_in']] + [b for (_, b) in layers], axis=0)

    # Edge-NN weights split into C lane-0-aligned column blocks.
    # w_edge: (ef, C*C) -> (C, ef, C);  b_edge: (1, C*C) -> (C, 1, C)
    w_edge_stk = params['w_edge'].reshape(ef, C, C).transpose(1, 0, 2)
    b_edge_stk = params['b_edge'].reshape(1, C, C).transpose(1, 0, 2)

    src_col = src.astype(jnp.int32).reshape(E, 1)
    dst_row = dst.astype(jnp.int32).reshape(1, E)

    inputs = [src_col, dst_row, x, edge_attr,
              params['w_in'], w_sq, b_all,
              w_edge_stk, b_edge_stk,
              params['w_out'], params['b_out']]

    vmem = pl.BlockSpec(memory_space=pltpu.MemorySpace.VMEM)

    kernel = functools.partial(
        _fused_kernel, N=N, E=E, C=C,
        enc_depth=len(enc), gnn_depth=len(gnn), dec_depth=len(dec),
        out_pad=OUT_PAD)

    out_padded = pl.pallas_call(
        kernel,
        out_shape=jax.ShapeDtypeStruct((N, OUT_PAD), jnp.float32),
        in_specs=[vmem] * len(inputs),
        out_specs=vmem,
    )(*inputs)

    return out_padded[:, :2]   # lane-dense kernel output; slice logits outside


# ----------------------------------------------------------------------------
# Pure-JAX reference (for correctness check).
# ----------------------------------------------------------------------------
def reference_forward(params, x, edge_attr, src, dst, num_nodes, channel_width):
    C = channel_width
    E = edge_attr.shape[0]
    h = x @ params['w_in'] + params['b_in']
    for (w, b) in params['encoder']:
        h = _leaky_relu(h) @ w + b
    ew = _leaky_relu(edge_attr @ params['w_edge'] + params['b_edge'])  # (E, C*C)
    W3 = ew.reshape(E, C, C)
    for (wroot, broot) in params['gnn']:
        ha = _leaky_relu(h)
        xs = ha[src]                                                   # (E, C)
        m = jnp.einsum('ec,ecd->ed', xs, W3)                           # (E, C)
        agg = jnp.zeros((num_nodes, C), jnp.float32).at[dst].add(m)
        h = agg + ha @ wroot + broot
    for (w, b) in params['decoder']:
        h = _leaky_relu(h) @ w + b
    z = h @ params['w_out'] + params['b_out']                          # (N, 1)
    out = z[:, 0]
    logits = jnp.stack([jnp.zeros_like(out), out], axis=1)
    return jax.nn.log_softmax(logits, axis=1)


def _init_linear(key, fan_in, fan_out):
    kw, kb = jax.random.split(key)
    lim = 1.0 / np.sqrt(fan_in)
    w = jax.random.uniform(kw, (fan_in, fan_out), jnp.float32, -lim, lim)
    b = jax.random.uniform(kb, (1, fan_out), jnp.float32, -lim, lim)
    return w, b


if __name__ == "__main__":
    # Model configuration (small, consistent with the module's __init__).
    in_features, edge_features = 4, 3
    channel_width = 8
    encoder_depth, gnn_depth, decoder_depth = 1, 2, 1
    out_features = 1          # required by squeeze(-1) + binary log_softmax head
    num_nodes, num_edges = 8, 16

    key = jax.random.PRNGKey(0)
    keys = jax.random.split(key, 16)

    # Parameters (deterministic synthetic init).
    params = {}
    params['w_in'], params['b_in'] = _init_linear(keys[0], in_features, channel_width)
    params['encoder'] = [_init_linear(keys[1 + i], channel_width, channel_width)
                         for i in range(encoder_depth)]
    params['w_edge'], params['b_edge'] = _init_linear(
        keys[4], edge_features, channel_width * channel_width)   # shared edge_nn
    params['gnn'] = [_init_linear(keys[5 + i], channel_width, channel_width)
                     for i in range(gnn_depth)]                  # (W_root, bias) per layer
    params['decoder'] = [_init_linear(keys[8 + i], channel_width, channel_width)
                         for i in range(decoder_depth)]
    params['w_out'], params['b_out'] = _init_linear(keys[12], channel_width, out_features)

    # Graph data.
    x = jax.random.normal(keys[13], (num_nodes, in_features), jnp.float32)
    edge_attr = jax.random.normal(keys[14], (num_edges, edge_features), jnp.float32)
    edge_index = jax.random.randint(keys[15], (2, num_edges), 0, num_nodes, jnp.int32)
    src, dst = edge_index[0], edge_index[1]   # PyG: row 0 = source j, row 1 = target i

    out = nnconvnet_forward(params, x, edge_attr, src, dst, num_nodes, channel_width)
    out = jax.block_until_ready(out)

    ref = reference_forward(params, x, edge_attr, src, dst, num_nodes, channel_width)
    np.testing.assert_allclose(np.asarray(out), np.asarray(ref), rtol=1e-4, atol=1e-4)

    print("KERNEL_OK")
</pallas_src>

<mosaic_0001>
module attributes {stable_mosaic.version = 11 : i64} {
  func.func @_fused_kernel(%arg0: memref<16x1xi32, #tpu.memory_space<vmem>>, %arg1: memref<1x16xi32, #tpu.memory_space<vmem>>, %arg2: memref<8x4xf32, #tpu.memory_space<vmem>>, %arg3: memref<16x3xf32, #tpu.memory_space<vmem>>, %arg4: memref<4x8xf32, #tpu.memory_space<vmem>>, %arg5: memref<4x8x8xf32, #tpu.memory_space<vmem>>, %arg6: memref<5x8xf32, #tpu.memory_space<vmem>>, %arg7: memref<8x3x8xf32, #tpu.memory_space<vmem>>, %arg8: memref<8x1x8xf32, #tpu.memory_space<vmem>>, %arg9: memref<8x1xf32, #tpu.memory_space<vmem>>, %arg10: memref<1x1xf32, #tpu.memory_space<vmem>>, %arg11: memref<8x128xf32, #tpu.memory_space<vmem>>) attributes {dimension_semantics = [], scalar_prefetch = 0 : i64, scratch_operands = 0 : i64, tpu.core_type = #tpu.core_type<tc>} {
    %c0 = arith.constant 0 : index
    %c0_0 = arith.constant 0 : index
    %0 = vector.load %arg2[%c0, %c0_0] : memref<8x4xf32, #tpu.memory_space<vmem>>, vector<8x4xf32>
    %c0_1 = arith.constant 0 : index
    %c0_2 = arith.constant 0 : index
    %1 = vector.load %arg4[%c0_1, %c0_2] : memref<4x8xf32, #tpu.memory_space<vmem>>, vector<4x8xf32>
    %cst = arith.constant dense<0.000000e+00> : vector<8x8xf32>
    %2 = tpu.matmul %0, %1, %cst {dimension_numbers = #tpu.dot_dimension_numbers<[1], [0], [0], [1], [0, 0, 1, 1], [], []>} : vector<8x4xf32>, vector<4x8xf32>, vector<8x8xf32> -> vector<8x8xf32>
    %c0_3 = arith.constant 0 : index
    %c0_4 = arith.constant 0 : index
    %3 = vector.load %arg6[%c0_3, %c0_4] : memref<5x8xf32, #tpu.memory_space<vmem>>, vector<1x8xf32>
    %4 = vector.broadcast %3 : vector<1x8xf32> to vector<8x8xf32>
    %5 = arith.addf %2, %4 : vector<8x8xf32>
    %c0_5 = arith.constant 0 : index
    %c0_6 = arith.constant 0 : index
    %c0_7 = arith.constant 0 : index
    %6 = vector.load %arg5[%c0_5, %c0_6, %c0_7] : memref<4x8x8xf32, #tpu.memory_space<vmem>>, vector<1x8x8xf32>
    %7 = vector.shape_cast %6 : vector<1x8x8xf32> to vector<8x8xf32>
    %c1 = arith.constant 1 : index
    %c0_8 = arith.constant 0 : index
    %8 = vector.load %arg6[%c1, %c0_8] : memref<5x8xf32, #tpu.memory_space<vmem>>, vector<1x8xf32>
    %cst_9 = arith.constant 0.000000e+00 : f32
    %9 = vector.broadcast %cst_9 : f32 to vector<8x8xf32>
    %10 = arith.cmpf oge, %5, %9 : vector<8x8xf32>
    %cst_10 = arith.constant 0.00999999977 : f32
    %11 = vector.broadcast %cst_10 : f32 to vector<8x8xf32>
    %12 = arith.mulf %11, %5 : vector<8x8xf32>
    %13 = arith.select %10, %5, %12 : vector<8x8xi1>, vector<8x8xf32>
    %cst_11 = arith.constant dense<0.000000e+00> : vector<8x8xf32>
    %14 = tpu.matmul %13, %7, %cst_11 {dimension_numbers = #tpu.dot_dimension_numbers<[1], [0], [0], [1], [0, 0, 1, 1], [], []>} : vector<8x8xf32>, vector<8x8xf32>, vector<8x8xf32> -> vector<8x8xf32>
    %15 = vector.broadcast %8 : vector<1x8xf32> to vector<8x8xf32>
    %16 = arith.addf %14, %15 : vector<8x8xf32>
    %c0_12 = arith.constant 0 : index
    %c0_13 = arith.constant 0 : index
    %17 = vector.load %arg3[%c0_12, %c0_13] : memref<16x3xf32, #tpu.memory_space<vmem>>, vector<16x3xf32>
    %c0_14 = arith.constant 0 : index
    %c0_15 = arith.constant 0 : index
    %c0_16 = arith.constant 0 : index
    %18 = vector.load %arg7[%c0_14, %c0_15, %c0_16] : memref<8x3x8xf32, #tpu.memory_space<vmem>>, vector<1x3x8xf32>
    %19 = vector.shape_cast %18 : vector<1x3x8xf32> to vector<3x8xf32>
    %cst_17 = arith.constant dense<0.000000e+00> : vector<16x8xf32>
    %20 = tpu.matmul %17, %19, %cst_17 {dimension_numbers = #tpu.dot_dimension_numbers<[1], [0], [0], [1], [0, 0, 1, 1], [], []>} : vector<16x3xf32>, vector<3x8xf32>, vector<16x8xf32> -> vector<16x8xf32>
    %c0_18 = arith.constant 0 : index
    %c0_19 = arith.constant 0 : index
    %c0_20 = arith.constant 0 : index
    %21 = vector.load %arg8[%c0_18, %c0_19, %c0_20] : memref<8x1x8xf32, #tpu.memory_space<vmem>>, vector<1x1x8xf32>
    %22 = vector.shape_cast %21 : vector<1x1x8xf32> to vector<1x8xf32>
    %23 = vector.broadcast %22 : vector<1x8xf32> to vector<16x8xf32>
    %24 = arith.addf %20, %23 : vector<16x8xf32>
    %cst_21 = arith.constant 0.000000e+00 : f32
    %25 = vector.broadcast %cst_21 : f32 to vector<16x8xf32>
    %26 = arith.cmpf oge, %24, %25 : vector<16x8xf32>
    %cst_22 = arith.constant 0.00999999977 : f32
    %27 = vector.broadcast %cst_22 : f32 to vector<16x8xf32>
    %28 = arith.mulf %27, %24 : vector<16x8xf32>
    %29 = arith.select %26, %24, %28 : vector<16x8xi1>, vector<16x8xf32>
    %c0_23 = arith.constant 0 : index
    %c0_24 = arith.constant 0 : index
    %30 = vector.load %arg3[%c0_23, %c0_24] : memref<16x3xf32, #tpu.memory_space<vmem>>, vector<16x3xf32>
    %c1_25 = arith.constant 1 : index
    %c0_26 = arith.constant 0 : index
    %c0_27 = arith.constant 0 : index
    %31 = vector.load %arg7[%c1_25, %c0_26, %c0_27] : memref<8x3x8xf32, #tpu.memory_space<vmem>>, vector<1x3x8xf32>
    %32 = vector.shape_cast %31 : vector<1x3x8xf32> to vector<3x8xf32>
    %cst_28 = arith.constant dense<0.000000e+00> : vector<16x8xf32>
    %33 = tpu.matmul %30, %32, %cst_28 {dimension_numbers = #tpu.dot_dimension_numbers<[1], [0], [0], [1], [0, 0, 1, 1], [], []>} : vector<16x3xf32>, vector<3x8xf32>, vector<16x8xf32> -> vector<16x8xf32>
    %c1_29 = arith.constant 1 : index
    %c0_30 = arith.constant 0 : index
    %c0_31 = arith.constant 0 : index
    %34 = vector.load %arg8[%c1_29, %c0_30, %c0_31] : memref<8x1x8xf32, #tpu.memory_space<vmem>>, vector<1x1x8xf32>
    %35 = vector.shape_cast %34 : vector<1x1x8xf32> to vector<1x8xf32>
    %36 = vector.broadcast %35 : vector<1x8xf32> to vector<16x8xf32>
    %37 = arith.addf %33, %36 : vector<16x8xf32>
    %cst_32 = arith.constant 0.000000e+00 : f32
    %38 = vector.broadcast %cst_32 : f32 to vector<16x8xf32>
    %39 = arith.cmpf oge, %37, %38 : vector<16x8xf32>
    %cst_33 = arith.constant 0.00999999977 : f32
    %40 = vector.broadcast %cst_33 : f32 to vector<16x8xf32>
    %41 = arith.mulf %40, %37 : vector<16x8xf32>
    %42 = arith.select %39, %37, %41 : vector<16x8xi1>, vector<16x8xf32>
    %c0_34 = arith.constant 0 : index
    %c0_35 = arith.constant 0 : index
    %43 = vector.load %arg3[%c0_34, %c0_35] : memref<16x3xf32, #tpu.memory_space<vmem>>, vector<16x3xf32>
    %c2 = arith.constant 2 : index
    %c0_36 = arith.constant 0 : index
    %c0_37 = arith.constant 0 : index
    %44 = vector.load %arg7[%c2, %c0_36, %c0_37] : memref<8x3x8xf32, #tpu.memory_space<vmem>>, vector<1x3x8xf32>
    %45 = vector.shape_cast %44 : vector<1x3x8xf32> to vector<3x8xf32>
    %cst_38 = arith.constant dense<0.000000e+00> : vector<16x8xf32>
    %46 = tpu.matmul %43, %45, %cst_38 {dimension_numbers = #tpu.dot_dimension_numbers<[1], [0], [0], [1], [0, 0, 1, 1], [], []>} : vector<16x3xf32>, vector<3x8xf32>, vector<16x8xf32> -> vector<16x8xf32>
    %c2_39 = arith.constant 2 : index
    %c0_40 = arith.constant 0 : index
    %c0_41 = arith.constant 0 : index
    %47 = vector.load %arg8[%c2_39, %c0_40, %c0_41] : memref<8x1x8xf32, #tpu.memory_space<vmem>>, vector<1x1x8xf32>
    %48 = vector.shape_cast %47 : vector<1x1x8xf32> to vector<1x8xf32>
    %49 = vector.broadcast %48 : vector<1x8xf32> to vector<16x8xf32>
    %50 = arith.addf %46, %49 : vector<16x8xf32>
    %cst_42 = arith.constant 0.000000e+00 : f32
    %51 = vector.broadcast %cst_42 : f32 to vector<16x8xf32>
    %52 = arith.cmpf oge, %50, %51 : vector<16x8xf32>
    %cst_43 = arith.constant 0.00999999977 : f32
    %53 = vector.broadcast %cst_43 : f32 to vector<16x8xf32>
    %54 = arith.mulf %53, %50 : vector<16x8xf32>
    %55 = arith.select %52, %50, %54 : vector<16x8xi1>, vector<16x8xf32>
    %c0_44 = arith.constant 0 : index
    %c0_45 = arith.constant 0 : index
    %56 = vector.load %arg3[%c0_44, %c0_45] : memref<16x3xf32, #tpu.memory_space<vmem>>, vector<16x3xf32>
    %c3 = arith.constant 3 : index
    %c0_46 = arith.constant 0 : index
    %c0_47 = arith.constant 0 : index
    %57 = vector.load %arg7[%c3, %c0_46, %c0_47] : memref<8x3x8xf32, #tpu.memory_space<vmem>>, vector<1x3x8xf32>
    %58 = vector.shape_cast %57 : vector<1x3x8xf32> to vector<3x8xf32>
    %cst_48 = arith.constant dense<0.000000e+00> : vector<16x8xf32>
    %59 = tpu.matmul %56, %58, %cst_48 {dimension_numbers = #tpu.dot_dimension_numbers<[1], [0], [0], [1], [0, 0, 1, 1], [], []>} : vector<16x3xf32>, vector<3x8xf32>, vector<16x8xf32> -> vector<16x8xf32>
    %c3_49 = arith.constant 3 : index
    %c0_50 = arith.constant 0 : index
    %c0_51 = arith.constant 0 : index
    %60 = vector.load %arg8[%c3_49, %c0_50, %c0_51] : memref<8x1x8xf32, #tpu.memory_space<vmem>>, vector<1x1x8xf32>
    %61 = vector.shape_cast %60 : vector<1x1x8xf32> to vector<1x8xf32>
    %62 = vector.broadcast %61 : vector<1x8xf32> to vector<16x8xf32>
    %63 = arith.addf %59, %62 : vector<16x8xf32>
    %cst_52 = arith.constant 0.000000e+00 : f32
    %64 = vector.broadcast %cst_52 : f32 to vector<16x8xf32>
    %65 = arith.cmpf oge, %63, %64 : vector<16x8xf32>
    %cst_53 = arith.constant 0.00999999977 : f32
    %66 = vector.broadcast %cst_53 : f32 to vector<16x8xf32>
    %67 = arith.mulf %66, %63 : vector<16x8xf32>
    %68 = arith.select %65, %63, %67 : vector<16x8xi1>, vector<16x8xf32>
    %c0_54 = arith.constant 0 : index
    %c0_55 = arith.constant 0 : index
    %69 = vector.load %arg3[%c0_54, %c0_55] : memref<16x3xf32, #tpu.memory_space<vmem>>, vector<16x3xf32>
    %c4 = arith.constant 4 : index
    %c0_56 = arith.constant 0 : index
    %c0_57 = arith.constant 0 : index
    %70 = vector.load %arg7[%c4, %c0_56, %c0_57] : memref<8x3x8xf32, #tpu.memory_space<vmem>>, vector<1x3x8xf32>
    %71 = vector.shape_cast %70 : vector<1x3x8xf32> to vector<3x8xf32>
    %cst_58 = arith.constant dense<0.000000e+00> : vector<16x8xf32>
    %72 = tpu.matmul %69, %71, %cst_58 {dimension_numbers = #tpu.dot_dimension_numbers<[1], [0], [0], [1], [0, 0, 1, 1], [], []>} : vector<16x3xf32>, vector<3x8xf32>, vector<16x8xf32> -> vector<16x8xf32>
    %c4_59 = arith.constant 4 : index
    %c0_60 = arith.constant 0 : index
    %c0_61 = arith.constant 0 : index
    %73 = vector.load %arg8[%c4_59, %c0_60, %c0_61] : memref<8x1x8xf32, #tpu.memory_space<vmem>>, vector<1x1x8xf32>
    %74 = vector.shape_cast %73 : vector<1x1x8xf32> to vector<1x8xf32>
    %75 = vector.broadcast %74 : vector<1x8xf32> to vector<16x8xf32>
    %76 = arith.addf %72, %75 : vector<16x8xf32>
    %cst_62 = arith.constant 0.000000e+00 : f32
    %77 = vector.broadcast %cst_62 : f32 to vector<16x8xf32>
    %78 = arith.cmpf oge, %76, %77 : vector<16x8xf32>
    %cst_63 = arith.constant 0.00999999977 : f32
    %79 = vector.broadcast %cst_63 : f32 to vector<16x8xf32>
    %80 = arith.mulf %79, %76 : vector<16x8xf32>
    %81 = arith.select %78, %76, %80 : vector<16x8xi1>, vector<16x8xf32>
    %c0_64 = arith.constant 0 : index
    %c0_65 = arith.constant 0 : index
    %82 = vector.load %arg3[%c0_64, %c0_65] : memref<16x3xf32, #tpu.memory_space<vmem>>, vector<16x3xf32>
    %c5 = arith.constant 5 : index
    %c0_66 = arith.constant 0 : index
    %c0_67 = arith.constant 0 : index
    %83 = vector.load %arg7[%c5, %c0_66, %c0_67] : memref<8x3x8xf32, #tpu.memory_space<vmem>>, vector<1x3x8xf32>
    %84 = vector.shape_cast %83 : vector<1x3x8xf32> to vector<3x8xf32>
    %cst_68 = arith.constant dense<0.000000e+00> : vector<16x8xf32>
    %85 = tpu.matmul %82, %84, %cst_68 {dimension_numbers = #tpu.dot_dimension_numbers<[1], [0], [0], [1], [0, 0, 1, 1], [], []>} : vector<16x3xf32>, vector<3x8xf32>, vector<16x8xf32> -> vector<16x8xf32>
    %c5_69 = arith.constant 5 : index
    %c0_70 = arith.constant 0 : index
    %c0_71 = arith.constant 0 : index
    %86 = vector.load %arg8[%c5_69, %c0_70, %c0_71] : memref<8x1x8xf32, #tpu.memory_space<vmem>>, vector<1x1x8xf32>
    %87 = vector.shape_cast %86 : vector<1x1x8xf32> to vector<1x8xf32>
    %88 = vector.broadcast %87 : vector<1x8xf32> to vector<16x8xf32>
    %89 = arith.addf %85, %88 : vector<16x8xf32>
    %cst_72 = arith.constant 0.000000e+00 : f32
    %90 = vector.broadcast %cst_72 : f32 to vector<16x8xf32>
    %91 = arith.cmpf oge, %89, %90 : vector<16x8xf32>
    %cst_73 = arith.constant 0.00999999977 : f32
    %92 = vector.broadcast %cst_73 : f32 to vector<16x8xf32>
    %93 = arith.mulf %92, %89 : vector<16x8xf32>
    %94 = arith.select %91, %89, %93 : vector<16x8xi1>, vector<16x8xf32>
    %c0_74 = arith.constant 0 : index
    %c0_75 = arith.constant 0 : index
    %95 = vector.load %arg3[%c0_74, %c0_75] : memref<16x3xf32, #tpu.memory_space<vmem>>, vector<16x3xf32>
    %c6 = arith.constant 6 : index
    %c0_76 = arith.constant 0 : index
    %c0_77 = arith.constant 0 : index
    %96 = vector.load %arg7[%c6, %c0_76, %c0_77] : memref<8x3x8xf32, #tpu.memory_space<vmem>>, vector<1x3x8xf32>
    %97 = vector.shape_cast %96 : vector<1x3x8xf32> to vector<3x8xf32>
    %cst_78 = arith.constant dense<0.000000e+00> : vector<16x8xf32>
    %98 = tpu.matmul %95, %97, %cst_78 {dimension_numbers = #tpu.dot_dimension_numbers<[1], [0], [0], [1], [0, 0, 1, 1], [], []>} : vector<16x3xf32>, vector<3x8xf32>, vector<16x8xf32> -> vector<16x8xf32>
    %c6_79 = arith.constant 6 : index
    %c0_80 = arith.constant 0 : index
    %c0_81 = arith.constant 0 : index
    %99 = vector.load %arg8[%c6_79, %c0_80, %c0_81] : memref<8x1x8xf32, #tpu.memory_space<vmem>>, vector<1x1x8xf32>
    %100 = vector.shape_cast %99 : vector<1x1x8xf32> to vector<1x8xf32>
    %101 = vector.broadcast %100 : vector<1x8xf32> to vector<16x8xf32>
    %102 = arith.addf %98, %101 : vector<16x8xf32>
    %cst_82 = arith.constant 0.000000e+00 : f32
    %103 = vector.broadcast %cst_82 : f32 to vector<16x8xf32>
    %104 = arith.cmpf oge, %102, %103 : vector<16x8xf32>
    %cst_83 = arith.constant 0.00999999977 : f32
    %105 = vector.broadcast %cst_83 : f32 to vector<16x8xf32>
    %106 = arith.mulf %105, %102 : vector<16x8xf32>
    %107 = arith.select %104, %102, %106 : vector<16x8xi1>, vector<16x8xf32>
    %c0_84 = arith.constant 0 : index
    %c0_85 = arith.constant 0 : index
    %108 = vector.load %arg3[%c0_84, %c0_85] : memref<16x3xf32, #tpu.memory_space<vmem>>, vector<16x3xf32>
    %c7 = arith.constant 7 : index
    %c0_86 = arith.constant 0 : index
    %c0_87 = arith.constant 0 : index
    %109 = vector.load %arg7[%c7, %c0_86, %c0_87] : memref<8x3x8xf32, #tpu.memory_space<vmem>>, vector<1x3x8xf32>
    %110 = vector.shape_cast %109 : vector<1x3x8xf32> to vector<3x8xf32>
    %cst_88 = arith.constant dense<0.000000e+00> : vector<16x8xf32>
    %111 = tpu.matmul %108, %110, %cst_88 {dimension_numbers = #tpu.dot_dimension_numbers<[1], [0], [0], [1], [0, 0, 1, 1], [], []>} : vector<16x3xf32>, vector<3x8xf32>, vector<16x8xf32> -> vector<16x8xf32>
    %c7_89 = arith.constant 7 : index
    %c0_90 = arith.constant 0 : index
    %c0_91 = arith.constant 0 : index
    %112 = vector.load %arg8[%c7_89, %c0_90, %c0_91] : memref<8x1x8xf32, #tpu.memory_space<vmem>>, vector<1x1x8xf32>
    %113 = vector.shape_cast %112 : vector<1x1x8xf32> to vector<1x8xf32>
    %114 = vector.broadcast %113 : vector<1x8xf32> to vector<16x8xf32>
    %115 = arith.addf %111, %114 : vector<16x8xf32>
    %cst_92 = arith.constant 0.000000e+00 : f32
    %116 = vector.broadcast %cst_92 : f32 to vector<16x8xf32>
    %117 = arith.cmpf oge, %115, %116 : vector<16x8xf32>
    %cst_93 = arith.constant 0.00999999977 : f32
    %118 = vector.broadcast %cst_93 : f32 to vector<16x8xf32>
    %119 = arith.mulf %118, %115 : vector<16x8xf32>
    %120 = arith.select %117, %115, %119 : vector<16x8xi1>, vector<16x8xf32>
    %c0_94 = arith.constant 0 : index
    %c0_95 = arith.constant 0 : index
    %121 = vector.load %arg0[%c0_94, %c0_95] : memref<16x1xi32, #tpu.memory_space<vmem>>, vector<16x1xi32>
    %122 = tpu.iota {dimensions = array<i32: 1>} : vector<16x8xi32>
    %123 = vector.broadcast %121 : vector<16x1xi32> to vector<16x8xi32>
    %124 = arith.cmpi eq, %123, %122 : vector<16x8xi32>
    %125 = arith.extui %124 : vector<16x8xi1> to vector<16x8xi32>
    %126 = arith.sitofp %125 : vector<16x8xi32> to vector<16x8xf32>
    %127 = tpu.iota {dimensions = array<i32: 0>} : vector<8x16xi32>
    %c0_96 = arith.constant 0 : index
    %c0_97 = arith.constant 0 : index
    %128 = vector.load %arg1[%c0_96, %c0_97] : memref<1x16xi32, #tpu.memory_space<vmem>>, vector<1x16xi32>
    %129 = vector.broadcast %128 : vector<1x16xi32> to vector<8x16xi32>
    %130 = arith.cmpi eq, %127, %129 : vector<8x16xi32>
    %131 = arith.extui %130 : vector<8x16xi1> to vector<8x16xi32>
    %132 = arith.sitofp %131 : vector<8x16xi32> to vector<8x16xf32>
    %cst_98 = arith.constant 0.000000e+00 : f32
    %133 = vector.broadcast %cst_98 : f32 to vector<8x8xf32>
    %134 = arith.cmpf oge, %16, %133 : vector<8x8xf32>
    %cst_99 = arith.constant 0.00999999977 : f32
    %135 = vector.broadcast %cst_99 : f32 to vector<8x8xf32>
    %136 = arith.mulf %135, %16 : vector<8x8xf32>
    %137 = arith.select %134, %16, %136 : vector<8x8xi1>, vector<8x8xf32>
    %cst_100 = arith.constant dense<0.000000e+00> : vector<16x8xf32>
    %138 = tpu.matmul %126, %137, %cst_100 {dimension_numbers = #tpu.dot_dimension_numbers<[1], [0], [0], [1], [0, 0, 1, 1], [], []>} : vector<16x8xf32>, vector<8x8xf32>, vector<16x8xf32> -> vector<16x8xf32>
    %cst_101 = arith.constant 0.000000e+00 : f32
    %139 = vector.broadcast %cst_101 : f32 to vector<16x8xf32>
    %140 = vector.extract_strided_slice %138 {offsets = [0, 0], sizes = [16, 1], strides = [1, 1]} : vector<16x8xf32> to vector<16x1xf32>
    %141 = vector.broadcast %140 : vector<16x1xf32> to vector<16x8xf32>
    %142 = arith.mulf %141, %29 : vector<16x8xf32>
    %143 = arith.addf %139, %142 : vector<16x8xf32>
    %144 = vector.extract_strided_slice %138 {offsets = [0, 1], sizes = [16, 1], strides = [1, 1]} : vector<16x8xf32> to vector<16x1xf32>
    %145 = vector.broadcast %144 : vector<16x1xf32> to vector<16x8xf32>
    %146 = arith.mulf %145, %42 : vector<16x8xf32>
    %147 = arith.addf %143, %146 : vector<16x8xf32>
    %148 = vector.extract_strided_slice %138 {offsets = [0, 2], sizes = [16, 1], strides = [1, 1]} : vector<16x8xf32> to vector<16x1xf32>
    %149 = vector.broadcast %148 : vector<16x1xf32> to vector<16x8xf32>
    %150 = arith.mulf %149, %55 : vector<16x8xf32>
    %151 = arith.addf %147, %150 : vector<16x8xf32>
    %152 = vector.extract_strided_slice %138 {offsets = [0, 3], sizes = [16, 1], strides = [1, 1]} : vector<16x8xf32> to vector<16x1xf32>
    %153 = vector.broadcast %152 : vector<16x1xf32> to vector<16x8xf32>
    %154 = arith.mulf %153, %68 : vector<16x8xf32>
    %155 = arith.addf %151, %154 : vector<16x8xf32>
    %156 = vector.extract_strided_slice %138 {offsets = [0, 4], sizes = [16, 1], strides = [1, 1]} : vector<16x8xf32> to vector<16x1xf32>
    %157 = vector.broadcast %156 : vector<16x1xf32> to vector<16x8xf32>
    %158 = arith.mulf %157, %81 : vector<16x8xf32>
    %159 = arith.addf %155, %158 : vector<16x8xf32>
    %160 = vector.extract_strided_slice %138 {offsets = [0, 5], sizes = [16, 1], strides = [1, 1]} : vector<16x8xf32> to vector<16x1xf32>
    %161 = vector.broadcast %160 : vector<16x1xf32> to vector<16x8xf32>
    %162 = arith.mulf %161, %94 : vector<16x8xf32>
    %163 = arith.addf %159, %162 : vector<16x8xf32>
    %164 = vector.extract_strided_slice %138 {offsets = [0, 6], sizes = [16, 1], strides = [1, 1]} : vector<16x8xf32> to vector<16x1xf32>
    %165 = vector.broadcast %164 : vector<16x1xf32> to vector<16x8xf32>
    %166 = arith.mulf %165, %107 : vector<16x8xf32>
    %167 = arith.addf %163, %166 : vector<16x8xf32>
    %168 = vector.extract_strided_slice %138 {offsets = [0, 7], sizes = [16, 1], strides = [1, 1]} : vector<16x8xf32> to vector<16x1xf32>
    %169 = vector.broadcast %168 : vector<16x1xf32> to vector<16x8xf32>
    %170 = arith.mulf %169, %120 : vector<16x8xf32>
    %171 = arith.addf %167, %170 : vector<16x8xf32>
    %cst_102 = arith.constant dense<0.000000e+00> : vector<8x8xf32>
    %172 = tpu.matmul %132, %171, %cst_102 {dimension_numbers = #tpu.dot_dimension_numbers<[1], [0], [0], [1], [0, 0, 1, 1], [], []>} : vector<8x16xf32>, vector<16x8xf32>, vector<8x8xf32> -> vector<8x8xf32>
    %c1_103 = arith.constant 1 : index
    %c0_104 = arith.constant 0 : index
    %c0_105 = arith.constant 0 : index
    %173 = vector.load %arg5[%c1_103, %c0_104, %c0_105] : memref<4x8x8xf32, #tpu.memory_space<vmem>>, vector<1x8x8xf32>
    %174 = vector.shape_cast %173 : vector<1x8x8xf32> to vector<8x8xf32>
    %c2_106 = arith.constant 2 : index
    %c0_107 = arith.constant 0 : index
    %175 = vector.load %arg6[%c2_106, %c0_107] : memref<5x8xf32, #tpu.memory_space<vmem>>, vector<1x8xf32>
    %cst_108 = arith.constant dense<0.000000e+00> : vector<8x8xf32>
    %176 = tpu.matmul %137, %174, %cst_108 {dimension_numbers = #tpu.dot_dimension_numbers<[1], [0], [0], [1], [0, 0, 1, 1], [], []>} : vector<8x8xf32>, vector<8x8xf32>, vector<8x8xf32> -> vector<8x8xf32>
    %177 = arith.addf %172, %176 : vector<8x8xf32>
    %178 = vector.broadcast %175 : vector<1x8xf32> to vector<8x8xf32>
    %179 = arith.addf %177, %178 : vector<8x8xf32>
    %cst_109 = arith.constant 0.000000e+00 : f32
    %180 = vector.broadcast %cst_109 : f32 to vector<8x8xf32>
    %181 = arith.cmpf oge, %179, %180 : vector<8x8xf32>
    %cst_110 = arith.constant 0.00999999977 : f32
    %182 = vector.broadcast %cst_110 : f32 to vector<8x8xf32>
    %183 = arith.mulf %182, %179 : vector<8x8xf32>
    %184 = arith.select %181, %179, %183 : vector<8x8xi1>, vector<8x8xf32>
    %cst_111 = arith.constant dense<0.000000e+00> : vector<16x8xf32>
    %185 = tpu.matmul %126, %184, %cst_111 {dimension_numbers = #tpu.dot_dimension_numbers<[1], [0], [0], [1], [0, 0, 1, 1], [], []>} : vector<16x8xf32>, vector<8x8xf32>, vector<16x8xf32> -> vector<16x8xf32>
    %cst_112 = arith.constant 0.000000e+00 : f32
    %186 = vector.broadcast %cst_112 : f32 to vector<16x8xf32>
    %187 = vector.extract_strided_slice %185 {offsets = [0, 0], sizes = [16, 1], strides = [1, 1]} : vector<16x8xf32> to vector<16x1xf32>
    %188 = vector.broadcast %187 : vector<16x1xf32> to vector<16x8xf32>
    %189 = arith.mulf %188, %29 : vector<16x8xf32>
    %190 = arith.addf %186, %189 : vector<16x8xf32>
    %191 = vector.extract_strided_slice %185 {offsets = [0, 1], sizes = [16, 1], strides = [1, 1]} : vector<16x8xf32> to vector<16x1xf32>
    %192 = vector.broadcast %191 : vector<16x1xf32> to vector<16x8xf32>
    %193 = arith.mulf %192, %42 : vector<16x8xf32>
    %194 = arith.addf %190, %193 : vector<16x8xf32>
    %195 = vector.extract_strided_slice %185 {offsets = [0, 2], sizes = [16, 1], strides = [1, 1]} : vector<16x8xf32> to vector<16x1xf32>
    %196 = vector.broadcast %195 : vector<16x1xf32> to vector<16x8xf32>
    %197 = arith.mulf %196, %55 : vector<16x8xf32>
    %198 = arith.addf %194, %197 : vector<16x8xf32>
    %199 = vector.extract_strided_slice %185 {offsets = [0, 3], sizes = [16, 1], strides = [1, 1]} : vector<16x8xf32> to vector<16x1xf32>
    %200 = vector.broadcast %199 : vector<16x1xf32> to vector<16x8xf32>
    %201 = arith.mulf %200, %68 : vector<16x8xf32>
    %202 = arith.addf %198, %201 : vector<16x8xf32>
    %203 = vector.extract_strided_slice %185 {offsets = [0, 4], sizes = [16, 1], strides = [1, 1]} : vector<16x8xf32> to vector<16x1xf32>
    %204 = vector.broadcast %203 : vector<16x1xf32> to vector<16x8xf32>
    %205 = arith.mulf %204, %81 : vector<16x8xf32>
    %206 = arith.addf %202, %205 : vector<16x8xf32>
    %207 = vector.extract_strided_slice %185 {offsets = [0, 5], sizes = [16, 1], strides = [1, 1]} : vector<16x8xf32> to vector<16x1xf32>
    %208 = vector.broadcast %207 : vector<16x1xf32> to vector<16x8xf32>
    %209 = arith.mulf %208, %94 : vector<16x8xf32>
    %210 = arith.addf %206, %209 : vector<16x8xf32>
    %211 = vector.extract_strided_slice %185 {offsets = [0, 6], sizes = [16, 1], strides = [1, 1]} : vector<16x8xf32> to vector<16x1xf32>
    %212 = vector.broadcast %211 : vector<16x1xf32> to vector<16x8xf32>
    %213 = arith.mulf %212, %107 : vector<16x8xf32>
    %214 = arith.addf %210, %213 : vector<16x8xf32>
    %215 = vector.extract_strided_slice %185 {offsets = [0, 7], sizes = [16, 1], strides = [1, 1]} : vector<16x8xf32> to vector<16x1xf32>
    %216 = vector.broadcast %215 : vector<16x1xf32> to vector<16x8xf32>
    %217 = arith.mulf %216, %120 : vector<16x8xf32>
    %218 = arith.addf %214, %217 : vector<16x8xf32>
    %cst_113 = arith.constant dense<0.000000e+00> : vector<8x8xf32>
    %219 = tpu.matmul %132, %218, %cst_113 {dimension_numbers = #tpu.dot_dimension_numbers<[1], [0], [0], [1], [0, 0, 1, 1], [], []>} : vector<8x16xf32>, vector<16x8xf32>, vector<8x8xf32> -> vector<8x8xf32>
    %c2_114 = arith.constant 2 : index
    %c0_115 = arith.constant 0 : index
    %c0_116 = arith.constant 0 : index
    %220 = vector.load %arg5[%c2_114, %c0_115, %c0_116] : memref<4x8x8xf32, #tpu.memory_space<vmem>>, vector<1x8x8xf32>
    %221 = vector.shape_cast %220 : vector<1x8x8xf32> to vector<8x8xf32>
    %c3_117 = arith.constant 3 : index
    %c0_118 = arith.constant 0 : index
    %222 = vector.load %arg6[%c3_117, %c0_118] : memref<5x8xf32, #tpu.memory_space<vmem>>, vector<1x8xf32>
    %cst_119 = arith.constant dense<0.000000e+00> : vector<8x8xf32>
    %223 = tpu.matmul %184, %221, %cst_119 {dimension_numbers = #tpu.dot_dimension_numbers<[1], [0], [0], [1], [0, 0, 1, 1], [], []>} : vector<8x8xf32>, vector<8x8xf32>, vector<8x8xf32> -> vector<8x8xf32>
    %224 = arith.addf %219, %223 : vector<8x8xf32>
    %225 = vector.broadcast %222 : vector<1x8xf32> to vector<8x8xf32>
    %226 = arith.addf %224, %225 : vector<8x8xf32>
    %c3_120 = arith.constant 3 : index
    %c0_121 = arith.constant 0 : index
    %c0_122 = arith.constant 0 : index
    %227 = vector.load %arg5[%c3_120, %c0_121, %c0_122] : memref<4x8x8xf32, #tpu.memory_space<vmem>>, vector<1x8x8xf32>
    %228 = vector.shape_cast %227 : vector<1x8x8xf32> to vector<8x8xf32>
    %c4_123 = arith.constant 4 : index
    %c0_124 = arith.constant 0 : index
    %229 = vector.load %arg6[%c4_123, %c0_124] : memref<5x8xf32, #tpu.memory_space<vmem>>, vector<1x8xf32>
    %cst_125 = arith.constant 0.000000e+00 : f32
    %230 = vector.broadcast %cst_125 : f32 to vector<8x8xf32>
    %231 = arith.cmpf oge, %226, %230 : vector<8x8xf32>
    %cst_126 = arith.constant 0.00999999977 : f32
    %232 = vector.broadcast %cst_126 : f32 to vector<8x8xf32>
    %233 = arith.mulf %232, %226 : vector<8x8xf32>
    %234 = arith.select %231, %226, %233 : vector<8x8xi1>, vector<8x8xf32>
    %cst_127 = arith.constant dense<0.000000e+00> : vector<8x8xf32>
    %235 = tpu.matmul %234, %228, %cst_127 {dimension_numbers = #tpu.dot_dimension_numbers<[1], [0], [0], [1], [0, 0, 1, 1], [], []>} : vector<8x8xf32>, vector<8x8xf32>, vector<8x8xf32> -> vector<8x8xf32>
    %236 = vector.broadcast %229 : vector<1x8xf32> to vector<8x8xf32>
    %237 = arith.addf %235, %236 : vector<8x8xf32>
    %c0_128 = arith.constant 0 : index
    %c0_129 = arith.constant 0 : index
    %238 = vector.load %arg9[%c0_128, %c0_129] : memref<8x1xf32, #tpu.memory_space<vmem>>, vector<8x1xf32>
    %cst_130 = arith.constant dense<0.000000e+00> : vector<8x1xf32>
    %239 = tpu.matmul %237, %238, %cst_130 {dimension_numbers = #tpu.dot_dimension_numbers<[1], [0], [0], [1], [0, 0, 1, 1], [], []>} : vector<8x8xf32>, vector<8x1xf32>, vector<8x1xf32> -> vector<8x1xf32>
    %c0_131 = arith.constant 0 : index
    %c0_132 = arith.constant 0 : index
    %240 = vector.load %arg10[%c0_131, %c0_132] : memref<1x1xf32, #tpu.memory_space<vmem>>, vector<1x1xf32>
    %241 = vector.broadcast %240 : vector<1x1xf32> to vector<8x1xf32>
    %242 = arith.addf %239, %241 : vector<8x1xf32>
    %cst_133 = arith.constant 0.000000e+00 : f32
    %243 = vector.broadcast %cst_133 : f32 to vector<8x1xf32>
    %244 = arith.maximumf %242, %243 : vector<8x1xf32>
    %cst_134 = arith.constant 0.000000e+00 : f32
    %245 = vector.broadcast %cst_134 : f32 to vector<8x1xf32>
    %246 = arith.subf %245, %244 : vector<8x1xf32>
    %247 = math.exp %246 : vector<8x1xf32>
    %248 = arith.subf %242, %244 : vector<8x1xf32>
    %249 = math.exp %248 : vector<8x1xf32>
    %250 = arith.addf %247, %249 : vector<8x1xf32>
    %251 = math.log %250 : vector<8x1xf32>
    %252 = arith.addf %244, %251 : vector<8x1xf32>
    %253 = tpu.iota {dimensions = array<i32: 1>} : vector<8x128xi32>
    %c0_i32 = arith.constant 0 : i32
    %254 = vector.broadcast %c0_i32 : i32 to vector<8x128xi32>
    %255 = arith.cmpi eq, %253, %254 : vector<8x128xi32>
    %cst_135 = arith.constant 0.000000e+00 : f32
    %256 = vector.broadcast %cst_135 : f32 to vector<8x1xf32>
    %257 = arith.subf %256, %252 : vector<8x1xf32>
    %c1_i32 = arith.constant 1 : i32
    %258 = vector.broadcast %c1_i32 : i32 to vector<8x128xi32>
    %259 = arith.cmpi eq, %253, %258 : vector<8x128xi32>
    %260 = arith.subf %242, %252 : vector<8x1xf32>
    %cst_136 = arith.constant 0.000000e+00 : f32
    %261 = vector.shape_cast %260 : vector<8x1xf32> to vector<8x1xf32>
    %262 = vector.broadcast %261 : vector<8x1xf32> to vector<8x128xf32>
    %263 = vector.broadcast %cst_136 : f32 to vector<8x128xf32>
    %264 = arith.select %259, %262, %263 : vector<8x128xi1>, vector<8x128xf32>
    %265 = vector.shape_cast %257 : vector<8x1xf32> to vector<8x1xf32>
    %266 = vector.broadcast %265 : vector<8x1xf32> to vector<8x128xf32>
    %267 = arith.select %255, %266, %264 : vector<8x128xi1>, vector<8x128xf32>
    %c0_137 = arith.constant 0 : index
    %c0_138 = arith.constant 0 : index
    %268 = vector.load %arg11[%c0_137, %c0_138] : memref<8x128xf32, #tpu.memory_space<vmem>>, vector<8x128xf32>
    tpu.vector_store %arg11[%c0_137, %c0_138], %267 {strides = array<i32>} : memref<8x128xf32, #tpu.memory_space<vmem>>, vector<8x128xf32>,
    return
  }
}

</mosaic_0001>

<llo_original>
// kernel: tpu_custom_call.1
$region0: #{tpu_custom_call.1}
  #allocation0 [shape = 'u32[]', space=smem, size = 0x4, offset = 0x4, fixed_abs, tag = 'smem constant byte address 0x4 - core index']
  #allocation1 [shape = 'u32[144,128]{1,0:T(1,128)}', space=vmem, size = 0x12000, scoped, tag = 'internal scratch']
  #allocation2 [shape = 'f32[1,1]{1,0:T(1,128)S(1)}', space=vmem, size = 0x200, scoped, tag = 'scoped memory for tpu_custom_call.1']
  %s0 = inlined_call_operand.vmem [shape: s32[16,1], index: 0, kind: input, shape index: {}]
  %s1 = inlined_call_operand.vmem [shape: s32[1,16], index: 1, kind: input, shape index: {}]
  %s2 = inlined_call_operand.vmem [shape: f32[8,4], index: 2, kind: input, shape index: {}]
  %s3 = inlined_call_operand.vmem [shape: f32[16,3], index: 3, kind: input, shape index: {}]
  %s4 = inlined_call_operand.vmem [shape: f32[4,8], index: 4, kind: input, shape index: {}]
  %s5 = inlined_call_operand.vmem [shape: f32[4,8,8], index: 5, kind: input, shape index: {}]
  %s6 = inlined_call_operand.vmem [shape: f32[5,8], index: 6, kind: input, shape index: {}]
  %s7 = inlined_call_operand.vmem [shape: f32[8,3,8], index: 7, kind: input, shape index: {}]
  %s8 = inlined_call_operand.vmem [shape: f32[8,1,8], index: 8, kind: input, shape index: {}]
  %s9 = inlined_call_operand.vmem [shape: f32[8,1], index: 9, kind: input, shape index: {}]
  %s10 = inlined_call_operand.<no memory space> [shape: f32[1,1], index: 10, kind: input, shape index: {}]
  %s11 = inlined_call_operand.hbm [shape: f32[8,128], index: 11, kind: output, shape index: {}]
  %s12 = sld [smem:[#allocation0]]
  $region54: #{tpu_custom_call.1} parent=0
    _
  %s14 = ssub.s32 1, %s12
  %s15 = scalar_select 0, %s14, %s12
  %v16 = vstv %s10
  %17 = vst [vmem:[#allocation2] sm:$0x1] %v16
  $region1: #{tpu_custom_call.1} parent=0
    #allocation3 [shape = 'u8[4096]{0}', space=vmem, size = 0x1000, scoped, tag = 'output window, operand 0, single buffered']
    #allocation4 [shape = 's32[1]{0}', space=sflag, size = 0x4, scoped, tag = 'scoped memory for tpu_custom_call.1']
    %18 = vsyncpa [#allocation4], 0
    // Predicated region
    $region2: #{tpu_custom_call.1} parent=1 // pred_check
      _
    $region3: #{tpu_custom_call.1} parent=1 // pred_check_branch
      %20 = sbr.rel (0) target = $region5
    $region4: #{tpu_custom_call.1} parent=1 // pred_region
      _
    $region5: #{tpu_custom_call.1} parent=1 // pred_fallthru
      _
    // Predicated region
    $region6: #{tpu_custom_call.1} parent=1 // pred_check
      _
    $region7: #{tpu_custom_call.1} parent=1 // pred_check_branch
      %22 = sbr.rel (0) target = $region9
    $region8: #{tpu_custom_call.1} parent=1 // pred_region
      _
    $region9: #{tpu_custom_call.1} parent=1 // pred_fallthru
      _
    // Predicated region
    $region10: #{tpu_custom_call.1} parent=1 // pred_check
      _
    $region11: #{tpu_custom_call.1} parent=1 // pred_check_branch
      %24 = sbr.rel (0) target = $region13
    $region12: #{tpu_custom_call.1} parent=1 // pred_region
      _
    $region13: #{tpu_custom_call.1} parent=1 // pred_fallthru
      _
    // Predicated region
    $region14: #{tpu_custom_call.1} parent=1 // pred_check
      _
    $region15: #{tpu_custom_call.1} parent=1 // pred_check_branch
      %26 = sbr.rel (0) target = $region17
    $region16: #{tpu_custom_call.1} parent=1 // pred_region
      _
    $region17: #{tpu_custom_call.1} parent=1 // pred_fallthru
      _
    // Predicated region
    $region18: #{tpu_custom_call.1} parent=1 // pred_check
      _
    $region19: #{tpu_custom_call.1} parent=1 // pred_check_branch
      %28 = sbr.rel (0) target = $region21
    $region20: #{tpu_custom_call.1} parent=1 // pred_region
      _
    $region21: #{tpu_custom_call.1} parent=1 // pred_fallthru
      _
    // Predicated region
    $region22: #{tpu_custom_call.1} parent=1 // pred_check
      _
    $region23: #{tpu_custom_call.1} parent=1 // pred_check_branch
      %30 = sbr.rel (0) target = $region25
    $region24: #{tpu_custom_call.1} parent=1 // pred_region
      _
    $region25: #{tpu_custom_call.1} parent=1 // pred_fallthru
      _
    // Predicated region
    $region26: #{tpu_custom_call.1} parent=1 // pred_check
      _
    $region27: #{tpu_custom_call.1} parent=1 // pred_check_branch
      %32 = sbr.rel (0) target = $region29
    $region28: #{tpu_custom_call.1} parent=1 // pred_region
      _
    $region29: #{tpu_custom_call.1} parent=1 // pred_fallthru
      _
    // Predicated region
    $region30: #{tpu_custom_call.1} parent=1 // pred_check
      _
    $region31: #{tpu_custom_call.1} parent=1 // pred_check_branch
      %34 = sbr.rel (0) target = $region33
    $region32: #{tpu_custom_call.1} parent=1 // pred_region
      _
    $region33: #{tpu_custom_call.1} parent=1 // pred_fallthru
      _
    // Predicated region
    $region34: #{tpu_custom_call.1} parent=1 // pred_check
      _
    $region35: #{tpu_custom_call.1} parent=1 // pred_check_branch
      %36 = sbr.rel (0) target = $region37
    $region36: #{tpu_custom_call.1} parent=1 // pred_region
      _
    $region37: #{tpu_custom_call.1} parent=1 // pred_fallthru
      _
    // Predicated region
    $region38: #{tpu_custom_call.1} parent=1 // pred_check
      _
    $region39: #{tpu_custom_call.1} parent=1 // pred_check_branch
      %38 = sbr.rel (0) target = $region41
    $region40: #{tpu_custom_call.1} parent=1 // pred_region
      _
    $region41: #{tpu_custom_call.1} parent=1 // pred_fallthru
      _
    // Predicated region
    $region42: #{tpu_custom_call.1} parent=1 // pred_check
      _
    $region43: #{tpu_custom_call.1} parent=1 // pred_check_branch
      %40 = sbr.rel (0) target = $region45
    $region44: #{tpu_custom_call.1} parent=1 // pred_region
      _
    $region45: #{tpu_custom_call.1} parent=1 // pred_fallthru
      _
    %v41 = vld [vmem:[%s2] sm:$0xff]
    %v42 = vld [vmem:[%s4] sm:$0xf]
    %v43 = vld [vmem:[%s6] sm:$0x1]
    %v44 = vlaneseq
    %v45 = vshrl.u32 %v44, 7
    %v46 = vsub.s32 0, %v45
    %v47 = vrot.slane %v43, %v46
    %vm48 = vcmask 31744
    %v50 = vsel %vm48, %v41, 0
    %vm52 = vcmask 1043456
    %v54 = vsel %vm52, %v42, 0
    %56 = vmatprep.subr.mxu0 0.0
    %57 = vmatpush1.msra.mxu0 %v54
    %58 = vmatprep.subr.mxu0 0.0
    %59 = vmatpush1.msra.mxu0 0.0
    %60 = vmatprep.subr.mxu0 0.0
    %61 = vmatpush1.msra.mxu0 0.0
    %62 = vmatprep.subr.mxu0 0.0
    %63 = vmatpush1.msra.mxu0 0.0
    %64 = vmatprep.subr.mxu0 0.0
    %65 = vmatpush1.msra.mxu0 0.0
    %66 = vmatprep.subr.mxu0 0.0
    %67 = vmatpush1.msra.mxu0 0.0
    %68 = vmatprep.subr.mxu0 0.0
    %69 = vmatpush1.msra.mxu0 0.0
    %70 = vmatprep.subr.mxu0 0.0
    %71 = vmatpush1.msra.mxu0 0.0
    %72 = vmatprep.subr.mxu0 0.0
    %73 = vmatpush1.msra.mxu0 0.0
    %74 = vmatprep.subr.mxu0 0.0
    %75 = vmatpush1.msra.mxu0 0.0
    %76 = vmatprep.subr.mxu0 0.0
    %77 = vmatpush1.msra.mxu0 0.0
    %78 = vmatprep.subr.mxu0 0.0
    %79 = vmatpush1.msra.mxu0 0.0
    %80 = vmatprep.subr.mxu0 0.0
    %81 = vmatpush1.msra.mxu0 0.0
    %82 = vmatprep.subr.mxu0 0.0
    %83 = vmatpush1.msra.mxu0 0.0
    %84 = vmatprep.subr.mxu0 0.0
    %85 = vmatpush1.msra.mxu0 0.0
    %86 = vmatprep.subr.mxu0 0.0
    %87 = vmatpush1.msra.mxu0 0.0
    %88 = vmatprep.subr.mxu0 0.0
    %89 = vmatpush1.msra.mxu0 0.0
    %90 = vmatprep.subr.mxu0 0.0
    %91 = vmatpush1.msra.mxu0 0.0
    %92 = vmatprep.subr.mxu0 0.0
    %93 = vmatpush1.msra.mxu0 0.0
    %94 = vmatprep.subr.mxu0 0.0
    %95 = vmatpush1.msra.mxu0 0.0
    %96 = vmatprep.subr.mxu0 0.0
    %97 = vmatpush1.msra.mxu0 0.0
    %98 = vmatprep.subr.mxu0 0.0
    %99 = vmatpush1.msra.mxu0 0.0
    %100 = vmatprep.subr.mxu0 0.0
    %101 = vmatpush1.msra.mxu0 0.0
    %102 = vmatprep.subr.mxu0 0.0
    %103 = vmatpush1.msra.mxu0 0.0
    %104 = vmatprep.subr.mxu0 0.0
    %105 = vmatpush1.msra.mxu0 0.0
    %106 = vmatprep.subr.mxu0 0.0
    %107 = vmatpush1.msra.mxu0 0.0
    %108 = vmatprep.subr.mxu0 0.0
    %109 = vmatpush1.msra.mxu0 0.0
    %110 = vmatprep.subr.mxu0 0.0
    %111 = vmatpush1.msra.mxu0 0.0
    %112 = vmatprep.subr.mxu0 0.0
    %113 = vmatpush1.msra.mxu0 0.0
    %114 = vmatprep.subr.mxu0 0.0
    %115 = vmatpush1.msra.mxu0 0.0
    %116 = vmatprep.subr.mxu0 0.0
    %117 = vmatpush1.msra.mxu0 0.0
    %118 = vmatprep.subr.mxu0 0.0
    %119 = vmatpush1.msra.mxu0 0.0
    %120 = vmatprep.mubr.f32.mxu0 0.0
    %121 = vmatmul.mubr.f32.gmra.mrb[0].mxu0 %v50
    %v122 = vpop.f32.mrb[0].mxu0
    %v123 = vadd.f32 %v47, %v122
    %v124 = vpop.f32.mrb[0].mxu0
    %125 = vdwg.mxu0
    %v126 = vld [vmem:[%s5] sm:$0xff]
    %v127 = vld [vmem:[%s6 + $0x1] sm:$0x1]
    %vm128 = vcmp.ge.f32.partialorder %v123, 0.0
    %v129 = vmul.f32 %v123, 0.01
    %v130 = vsel %vm128, %v123, %v129
    %v131 = vlaneseq
    %v132 = vshrl.u32 %v131, 7
    %v133 = vsub.s32 0, %v132
    %v134 = vrot.slane %v127, %v133
    %vm135 = vcmask 64512
    %v137 = vsel %vm135, %v130, 0
    %139 = vmatprep.subr.mxu0 0.0
    %140 = vmatpush1.msra.mxu0 %v126
    %141 = vmatprep.subr.mxu0 0.0
    %142 = vmatpush1.msra.mxu0 0.0
    %143 = vmatprep.subr.mxu0 0.0
    %144 = vmatpush1.msra.mxu0 0.0
    %145 = vmatprep.subr.mxu0 0.0
    %146 = vmatpush1.msra.mxu0 0.0
    %147 = vmatprep.subr.mxu0 0.0
    %148 = vmatpush1.msra.mxu0 0.0
    %149 = vmatprep.subr.mxu0 0.0
    %150 = vmatpush1.msra.mxu0 0.0
    %151 = vmatprep.subr.mxu0 0.0
    %152 = vmatpush1.msra.mxu0 0.0
    %153 = vmatprep.subr.mxu0 0.0
    %154 = vmatpush1.msra.mxu0 0.0
    %155 = vmatprep.subr.mxu0 0.0
    %156 = vmatpush1.msra.mxu0 0.0
    %157 = vmatprep.subr.mxu0 0.0
    %158 = vmatpush1.msra.mxu0 0.0
    %159 = vmatprep.subr.mxu0 0.0
    %160 = vmatpush1.msra.mxu0 0.0
    %161 = vmatprep.subr.mxu0 0.0
    %162 = vmatpush1.msra.mxu0 0.0
    %163 = vmatprep.subr.mxu0 0.0
    %164 = vmatpush1.msra.mxu0 0.0
    %165 = vmatprep.subr.mxu0 0.0
    %166 = vmatpush1.msra.mxu0 0.0
    %167 = vmatprep.subr.mxu0 0.0
    %168 = vmatpush1.msra.mxu0 0.0
    %169 = vmatprep.subr.mxu0 0.0
    %170 = vmatpush1.msra.mxu0 0.0
    %171 = vmatprep.subr.mxu0 0.0
    %172 = vmatpush1.msra.mxu0 0.0
    %173 = vmatprep.subr.mxu0 0.0
    %174 = vmatpush1.msra.mxu0 0.0
    %175 = vmatprep.subr.mxu0 0.0
    %176 = vmatpush1.msra.mxu0 0.0
    %177 = vmatprep.subr.mxu0 0.0
    %178 = vmatpush1.msra.mxu0 0.0
    %179 = vmatprep.subr.mxu0 0.0
    %180 = vmatpush1.msra.mxu0 0.0
    %181 = vmatprep.subr.mxu0 0.0
    %182 = vmatpush1.msra.mxu0 0.0
    %183 = vmatprep.subr.mxu0 0.0
    %184 = vmatpush1.msra.mxu0 0.0
    %185 = vmatprep.subr.mxu0 0.0
    %186 = vmatpush1.msra.mxu0 0.0
    %187 = vmatprep.subr.mxu0 0.0
    %188 = vmatpush1.msra.mxu0 0.0
    %189 = vmatprep.subr.mxu0 0.0
    %190 = vmatpush1.msra.mxu0 0.0
    %191 = vmatprep.subr.mxu0 0.0
    %192 = vmatpush1.msra.mxu0 0.0
    %193 = vmatprep.subr.mxu0 0.0
    %194 = vmatpush1.msra.mxu0 0.0
    %195 = vmatprep.subr.mxu0 0.0
    %196 = vmatpush1.msra.mxu0 0.0
    %197 = vmatprep.subr.mxu0 0.0
    %198 = vmatpush1.msra.mxu0 0.0
    %199 = vmatprep.subr.mxu0 0.0
    %200 = vmatpush1.msra.mxu0 0.0
    %201 = vmatprep.subr.mxu0 0.0
    %202 = vmatpush1.msra.mxu0 0.0
    %203 = vmatprep.mubr.f32.mxu0 0.0
    %204 = vmatmul.mubr.f32.gmra.mrb[0].mxu0 %v137
    %v205 = vpop.f32.mrb[0].mxu0
    %v206 = vadd.f32 %v134, %v205
    %v207 = vpop.f32.mrb[0].mxu0
    %208 = vdwg.mxu0
    %v209 = vld [vmem:[%s3] sm:$0xff]
    %v210 = vld [vmem:[%s3 + $0x8] sm:$0xff]
    %v211 = vld [vmem:[%s7] sm:$0x7]
    %v212 = vld [vmem:[%s8] sm:$0x1]
    %v214 = vlaneseq
    %v215 = vshrl.u32 %v214, 7
    %v216 = vsub.s32 0, %v215
    %v217 = vrot.slane %v212, %v216
    %vm219 = vcmask 23552
    %v221 = vsel %vm219, %v209, 0
    %v224 = vsel %vm219, %v210, 0
    %vm226 = vcmask 1042432
    %v228 = vsel %vm226, %v211, 0
    %230 = vmatprep.subr.mxu0 0.0
    %231 = vmatpush1.msra.mxu0 %v228
    %232 = vmatprep.subr.mxu0 0.0
    %233 = vmatpush1.msra.mxu0 0.0
    %234 = vmatprep.subr.mxu0 0.0
    %235 = vmatpush1.msra.mxu0 0.0
    %236 = vmatprep.subr.mxu0 0.0
    %237 = vmatpush1.msra.mxu0 0.0
    %238 = vmatprep.subr.mxu0 0.0
    %239 = vmatpush1.msra.mxu0 0.0
    %240 = vmatprep.subr.mxu0 0.0
    %241 = vmatpush1.msra.mxu0 0.0
    %242 = vmatprep.subr.mxu0 0.0
    %243 = vmatpush1.msra.mxu0 0.0
    %244 = vmatprep.subr.mxu0 0.0
    %245 = vmatpush1.msra.mxu0 0.0
    %246 = vmatprep.subr.mxu0 0.0
    %247 = vmatpush1.msra.mxu0 0.0
    %248 = vmatprep.subr.mxu0 0.0
    %249 = vmatpush1.msra.mxu0 0.0
    %250 = vmatprep.subr.mxu0 0.0
    %251 = vmatpush1.msra.mxu0 0.0
    %252 = vmatprep.subr.mxu0 0.0
    %253 = vmatpush1.msra.mxu0 0.0
    %254 = vmatprep.subr.mxu0 0.0
    %255 = vmatpush1.msra.mxu0 0.0
    %256 = vmatprep.subr.mxu0 0.0
    %257 = vmatpush1.msra.mxu0 0.0
    %258 = vmatprep.subr.mxu0 0.0
    %259 = vmatpush1.msra.mxu0 0.0
    %260 = vmatprep.subr.mxu0 0.0
    %261 = vmatpush1.msra.mxu0 0.0
    %262 = vmatprep.subr.mxu0 0.0
    %263 = vmatpush1.msra.mxu0 0.0
    %264 = vmatprep.subr.mxu0 0.0
    %265 = vmatpush1.msra.mxu0 0.0
    %266 = vmatprep.subr.mxu0 0.0
    %267 = vmatpush1.msra.mxu0 0.0
    %268 = vmatprep.subr.mxu0 0.0
    %269 = vmatpush1.msra.mxu0 0.0
    %270 = vmatprep.subr.mxu0 0.0
    %271 = vmatpush1.msra.mxu0 0.0
    %272 = vmatprep.subr.mxu0 0.0
    %273 = vmatpush1.msra.mxu0 0.0
    %274 = vmatprep.subr.mxu0 0.0
    %275 = vmatpush1.msra.mxu0 0.0
    %276 = vmatprep.subr.mxu0 0.0
    %277 = vmatpush1.msra.mxu0 0.0
    %278 = vmatprep.subr.mxu0 0.0
    %279 = vmatpush1.msra.mxu0 0.0
    %280 = vmatprep.subr.mxu0 0.0
    %281 = vmatpush1.msra.mxu0 0.0
    %282 = vmatprep.subr.mxu0 0.0
    %283 = vmatpush1.msra.mxu0 0.0
    %284 = vmatprep.subr.mxu0 0.0
    %285 = vmatpush1.msra.mxu0 0.0
    %286 = vmatprep.subr.mxu0 0.0
    %287 = vmatpush1.msra.mxu0 0.0
    %288 = vmatprep.subr.mxu0 0.0
    %289 = vmatpush1.msra.mxu0 0.0
    %290 = vmatprep.subr.mxu0 0.0
    %291 = vmatpush1.msra.mxu0 0.0
    %292 = vmatprep.subr.mxu0 0.0
    %293 = vmatpush1.msra.mxu0 0.0
    %294 = vmatprep.mubr.f32.mxu0 0.0
    %295 = vmatmul.mubr.f32.gmra.mrb[0].mxu0 %v221
    %v296 = vpop.f32.mrb[0].mxu0
    %v297 = vadd.f32 %v217, %v296
    %v298 = vpop.f32.mrb[0].mxu0
    %299 = vmatprep.mubr.f32.mxu0 0.0
    %300 = vmatmul.mubr.f32.gmra.mrb[0].mxu0 %v224
    %v301 = vpop.f32.mrb[0].mxu0
    %v302 = vadd.f32 %v217, %v301
    %v303 = vpop.f32.mrb[0].mxu0
    %304 = vdwg.mxu0
    %vm305 = vcmp.ge.f32.partialorder %v297, 0.0
    %vm306 = vcmp.ge.f32.partialorder %v302, 0.0
    %v307 = vmul.f32 %v297, 0.01
    %v308 = vmul.f32 %v302, 0.01
    %v309 = vsel %vm305, %v297, %v307
    %v310 = vsel %vm306, %v302, %v308
    %s311 = scalar_lea.vmem %s7, 4
    %v312 = vld [vmem:[%s311] sm:$0x7]
    %s313 = scalar_lea.vmem %s8, 1
    %v314 = vld [vmem:[%s313] sm:$0x1]
    %v316 = vlaneseq
    %v317 = vshrl.u32 %v316, 7
    %v318 = vsub.s32 0, %v317
    %v319 = vrot.slane %v314, %v318
    %v322 = vsel %vm226, %v312, 0
    %324 = vmatprep.subr.mxu0 0.0
    %325 = vmatpush1.msra.mxu0 %v322
    %326 = vmatprep.subr.mxu0 0.0
    %327 = vmatpush1.msra.mxu0 0.0
    %328 = vmatprep.subr.mxu0 0.0
    %329 = vmatpush1.msra.mxu0 0.0
    %330 = vmatprep.subr.mxu0 0.0
    %331 = vmatpush1.msra.mxu0 0.0
    %332 = vmatprep.subr.mxu0 0.0
    %333 = vmatpush1.msra.mxu0 0.0
    %334 = vmatprep.subr.mxu0 0.0
    %335 = vmatpush1.msra.mxu0 0.0
    %336 = vmatprep.subr.mxu0 0.0
    %337 = vmatpush1.msra.mxu0 0.0
    %338 = vmatprep.subr.mxu0 0.0
    %339 = vmatpush1.msra.mxu0 0.0
    %340 = vmatprep.subr.mxu0 0.0
    %341 = vmatpush1.msra.mxu0 0.0
    %342 = vmatprep.subr.mxu0 0.0
    %343 = vmatpush1.msra.mxu0 0.0
    %344 = vmatprep.subr.mxu0 0.0
    %345 = vmatpush1.msra.mxu0 0.0
    %346 = vmatprep.subr.mxu0 0.0
    %347 = vmatpush1.msra.mxu0 0.0
    %348 = vmatprep.subr.mxu0 0.0
    %349 = vmatpush1.msra.mxu0 0.0
    %350 = vmatprep.subr.mxu0 0.0
    %351 = vmatpush1.msra.mxu0 0.0
    %352 = vmatprep.subr.mxu0 0.0
    %353 = vmatpush1.msra.mxu0 0.0
    %354 = vmatprep.subr.mxu0 0.0
    %355 = vmatpush1.msra.mxu0 0.0
    %356 = vmatprep.subr.mxu0 0.0
    %357 = vmatpush1.msra.mxu0 0.0
    %358 = vmatprep.subr.mxu0 0.0
    %359 = vmatpush1.msra.mxu0 0.0
    %360 = vmatprep.subr.mxu0 0.0
    %361 = vmatpush1.msra.mxu0 0.0
    %362 = vmatprep.subr.mxu0 0.0
    %363 = vmatpush1.msra.mxu0 0.0
    %364 = vmatprep.subr.mxu0 0.0
    %365 = vmatpush1.msra.mxu0 0.0
    %366 = vmatprep.subr.mxu0 0.0
    %367 = vmatpush1.msra.mxu0 0.0
    %368 = vmatprep.subr.mxu0 0.0
    %369 = vmatpush1.msra.mxu0 0.0
    %370 = vmatprep.subr.mxu0 0.0
    %371 = vmatpush1.msra.mxu0 0.0
    %372 = vmatprep.subr.mxu0 0.0
    %373 = vmatpush1.msra.mxu0 0.0
    %374 = vmatprep.subr.mxu0 0.0
    %375 = vmatpush1.msra.mxu0 0.0
    %376 = vmatprep.subr.mxu0 0.0
    %377 = vmatpush1.msra.mxu0 0.0
    %378 = vmatprep.subr.mxu0 0.0
    %379 = vmatpush1.msra.mxu0 0.0
    %380 = vmatprep.subr.mxu0 0.0
    %381 = vmatpush1.msra.mxu0 0.0
    %382 = vmatprep.subr.mxu0 0.0
    %383 = vmatpush1.msra.mxu0 0.0
    %384 = vmatprep.subr.mxu0 0.0
    %385 = vmatpush1.msra.mxu0 0.0
    %386 = vmatprep.subr.mxu0 0.0
    %387 = vmatpush1.msra.mxu0 0.0
    %388 = vmatprep.mubr.f32.mxu0 0.0
    %389 = vmatmul.mubr.f32.gmra.mrb[0].mxu0 %v221
    %v390 = vpop.f32.mrb[0].mxu0
    %v391 = vadd.f32 %v319, %v390
    %v392 = vpop.f32.mrb[0].mxu0
    %393 = vmatprep.mubr.f32.mxu0 0.0
    %394 = vmatmul.mubr.f32.gmra.mrb[0].mxu0 %v224
    %v395 = vpop.f32.mrb[0].mxu0
    %v396 = vadd.f32 %v319, %v395
    %v397 = vpop.f32.mrb[0].mxu0
    %398 = vdwg.mxu0
    %vm399 = vcmp.ge.f32.partialorder %v391, 0.0
    %vm400 = vcmp.ge.f32.partialorder %v396, 0.0
    %v401 = vmul.f32 %v391, 0.01
    %v402 = vmul.f32 %v396, 0.01
    %v403 = vsel %vm399, %v391, %v401
    %v404 = vsel %vm400, %v396, %v402
    %s405 = scalar_lea.vmem %s7, 8
    %v406 = vld [vmem:[%s405] sm:$0x7]
    %s407 = scalar_lea.vmem %s8, 2
    %v408 = vld [vmem:[%s407] sm:$0x1]
    %v410 = vlaneseq
    %v411 = vshrl.u32 %v410, 7
    %v412 = vsub.s32 0, %v411
    %v413 = vrot.slane %v408, %v412
    %v416 = vsel %vm226, %v406, 0
    %418 = vmatprep.subr.mxu0 0.0
    %419 = vmatpush1.msra.mxu0 %v416
    %420 = vmatprep.subr.mxu0 0.0
    %421 = vmatpush1.msra.mxu0 0.0
    %422 = vmatprep.subr.mxu0 0.0
    %423 = vmatpush1.msra.mxu0 0.0
    %424 = vmatprep.subr.mxu0 0.0
    %425 = vmatpush1.msra.mxu0 0.0
    %426 = vmatprep.subr.mxu0 0.0
    %427 = vmatpush1.msra.mxu0 0.0
    %428 = vmatprep.subr.mxu0 0.0
    %429 = vmatpush1.msra.mxu0 0.0
    %430 = vmatprep.subr.mxu0 0.0
    %431 = vmatpush1.msra.mxu0 0.0
    %432 = vmatprep.subr.mxu0 0.0
    %433 = vmatpush1.msra.mxu0 0.0
    %434 = vmatprep.subr.mxu0 0.0
    %435 = vmatpush1.msra.mxu0 0.0
    %436 = vmatprep.subr.mxu0 0.0
    %437 = vmatpush1.msra.mxu0 0.0
    %438 = vmatprep.subr.mxu0 0.0
    %439 = vmatpush1.msra.mxu0 0.0
    %440 = vmatprep.subr.mxu0 0.0
    %441 = vmatpush1.msra.mxu0 0.0
    %442 = vmatprep.subr.mxu0 0.0
    %443 = vmatpush1.msra.mxu0 0.0
    %444 = vmatprep.subr.mxu0 0.0
    %445 = vmatpush1.msra.mxu0 0.0
    %446 = vmatprep.subr.mxu0 0.0
    %447 = vmatpush1.msra.mxu0 0.0
    %448 = vmatprep.subr.mxu0 0.0
    %449 = vmatpush1.msra.mxu0 0.0
    %450 = vmatprep.subr.mxu0 0.0
    %451 = vmatpush1.msra.mxu0 0.0
    %452 = vmatprep.subr.mxu0 0.0
    %453 = vmatpush1.msra.mxu0 0.0
    %454 = vmatprep.subr.mxu0 0.0
    %455 = vmatpush1.msra.mxu0 0.0
    %456 = vmatprep.subr.mxu0 0.0
    %457 = vmatpush1.msra.mxu0 0.0
    %458 = vmatprep.subr.mxu0 0.0
    %459 = vmatpush1.msra.mxu0 0.0
    %460 = vmatprep.subr.mxu0 0.0
    %461 = vmatpush1.msra.mxu0 0.0
    %462 = vmatprep.subr.mxu0 0.0
    %463 = vmatpush1.msra.mxu0 0.0
    %464 = vmatprep.subr.mxu0 0.0
    %465 = vmatpush1.msra.mxu0 0.0
    %466 = vmatprep.subr.mxu0 0.0
    %467 = vmatpush1.msra.mxu0 0.0
    %468 = vmatprep.subr.mxu0 0.0
    %469 = vmatpush1.msra.mxu0 0.0
    %470 = vmatprep.subr.mxu0 0.0
    %471 = vmatpush1.msra.mxu0 0.0
    %472 = vmatprep.subr.mxu0 0.0
    %473 = vmatpush1.msra.mxu0 0.0
    %474 = vmatprep.subr.mxu0 0.0
    %475 = vmatpush1.msra.mxu0 0.0
    %476 = vmatprep.subr.mxu0 0.0
    %477 = vmatpush1.msra.mxu0 0.0
    %478 = vmatprep.subr.mxu0 0.0
    %479 = vmatpush1.msra.mxu0 0.0
    %480 = vmatprep.subr.mxu0 0.0
    %481 = vmatpush1.msra.mxu0 0.0
    %482 = vmatprep.mubr.f32.mxu0 0.0
    %483 = vmatmul.mubr.f32.gmra.mrb[0].mxu0 %v221
    %v484 = vpop.f32.mrb[0].mxu0
    %v485 = vadd.f32 %v413, %v484
    %v486 = vpop.f32.mrb[0].mxu0
    %487 = vmatprep.mubr.f32.mxu0 0.0
    %488 = vmatmul.mubr.f32.gmra.mrb[0].mxu0 %v224
    %v489 = vpop.f32.mrb[0].mxu0
    %v490 = vadd.f32 %v413, %v489
    %v491 = vpop.f32.mrb[0].mxu0
    %492 = vdwg.mxu0
    %vm493 = vcmp.ge.f32.partialorder %v485, 0.0
    %vm494 = vcmp.ge.f32.partialorder %v490, 0.0
    %v495 = vmul.f32 %v485, 0.01
    %v496 = vmul.f32 %v490, 0.01
    %v497 = vsel %vm493, %v485, %v495
    %v498 = vsel %vm494, %v490, %v496
    %s499 = scalar_lea.vmem %s7, 12
    %v500 = vld [vmem:[%s499] sm:$0x7]
    %s501 = scalar_lea.vmem %s8, 3
    %v502 = vld [vmem:[%s501] sm:$0x1]
    %v504 = vlaneseq
    %v505 = vshrl.u32 %v504, 7
    %v506 = vsub.s32 0, %v505
    %v507 = vrot.slane %v502, %v506
    %v510 = vsel %vm226, %v500, 0
    %512 = vmatprep.subr.mxu0 0.0
    %513 = vmatpush1.msra.mxu0 %v510
    %514 = vmatprep.subr.mxu0 0.0
    %515 = vmatpush1.msra.mxu0 0.0
    %516 = vmatprep.subr.mxu0 0.0
    %517 = vmatpush1.msra.mxu0 0.0
    %518 = vmatprep.subr.mxu0 0.0
    %519 = vmatpush1.msra.mxu0 0.0
    %520 = vmatprep.subr.mxu0 0.0
    %521 = vmatpush1.msra.mxu0 0.0
    %522 = vmatprep.subr.mxu0 0.0
    %523 = vmatpush1.msra.mxu0 0.0
    %524 = vmatprep.subr.mxu0 0.0
    %525 = vmatpush1.msra.mxu0 0.0
    %526 = vmatprep.subr.mxu0 0.0
    %527 = vmatpush1.msra.mxu0 0.0
    %528 = vmatprep.subr.mxu0 0.0
    %529 = vmatpush1.msra.mxu0 0.0
    %530 = vmatprep.subr.mxu0 0.0
    %531 = vmatpush1.msra.mxu0 0.0
    %532 = vmatprep.subr.mxu0 0.0
    %533 = vmatpush1.msra.mxu0 0.0
    %534 = vmatprep.subr.mxu0 0.0
    %535 = vmatpush1.msra.mxu0 0.0
    %536 = vmatprep.subr.mxu0 0.0
    %537 = vmatpush1.msra.mxu0 0.0
    %538 = vmatprep.subr.mxu0 0.0
    %539 = vmatpush1.msra.mxu0 0.0
    %540 = vmatprep.subr.mxu0 0.0
    %541 = vmatpush1.msra.mxu0 0.0
    %542 = vmatprep.subr.mxu0 0.0
    %543 = vmatpush1.msra.mxu0 0.0
    %544 = vmatprep.subr.mxu0 0.0
    %545 = vmatpush1.msra.mxu0 0.0
    %546 = vmatprep.subr.mxu0 0.0
    %547 = vmatpush1.msra.mxu0 0.0
    %548 = vmatprep.subr.mxu0 0.0
    %549 = vmatpush1.msra.mxu0 0.0
    %550 = vmatprep.subr.mxu0 0.0
    %551 = vmatpush1.msra.mxu0 0.0
    %552 = vmatprep.subr.mxu0 0.0
    %553 = vmatpush1.msra.mxu0 0.0
    %554 = vmatprep.subr.mxu0 0.0
    %555 = vmatpush1.msra.mxu0 0.0
    %556 = vmatprep.subr.mxu0 0.0
    %557 = vmatpush1.msra.mxu0 0.0
    %558 = vmatprep.subr.mxu0 0.0
    %559 = vmatpush1.msra.mxu0 0.0
    %560 = vmatprep.subr.mxu0 0.0
    %561 = vmatpush1.msra.mxu0 0.0
    %562 = vmatprep.subr.mxu0 0.0
    %563 = vmatpush1.msra.mxu0 0.0
    %564 = vmatprep.subr.mxu0 0.0
    %565 = vmatpush1.msra.mxu0 0.0
    %566 = vmatprep.subr.mxu0 0.0
    %567 = vmatpush1.msra.mxu0 0.0
    %568 = vmatprep.subr.mxu0 0.0
    %569 = vmatpush1.msra.mxu0 0.0
    %570 = vmatprep.subr.mxu0 0.0
    %571 = vmatpush1.msra.mxu0 0.0
    %572 = vmatprep.subr.mxu0 0.0
    %573 = vmatpush1.msra.mxu0 0.0
    %574 = vmatprep.subr.mxu0 0.0
    %575 = vmatpush1.msra.mxu0 0.0
    %576 = vmatprep.mubr.f32.mxu0 0.0
    %577 = vmatmul.mubr.f32.gmra.mrb[0].mxu0 %v221
    %v578 = vpop.f32.mrb[0].mxu0
    %v579 = vadd.f32 %v507, %v578
    %v580 = vpop.f32.mrb[0].mxu0
    %581 = vmatprep.mubr.f32.mxu0 0.0
    %582 = vmatmul.mubr.f32.gmra.mrb[0].mxu0 %v224
    %v583 = vpop.f32.mrb[0].mxu0
    %v584 = vadd.f32 %v507, %v583
    %v585 = vpop.f32.mrb[0].mxu0
    %586 = vdwg.mxu0
    %vm587 = vcmp.ge.f32.partialorder %v579, 0.0
    %vm588 = vcmp.ge.f32.partialorder %v584, 0.0
    %v589 = vmul.f32 %v579, 0.01
    %v590 = vmul.f32 %v584, 0.01
    %v591 = vsel %vm587, %v579, %v589
    %v592 = vsel %vm588, %v584, %v590
    %s593 = scalar_lea.vmem %s7, 16
    %v594 = vld [vmem:[%s593] sm:$0x7]
    %s595 = scalar_lea.vmem %s8, 4
    %v596 = vld [vmem:[%s595] sm:$0x1]
    %v598 = vlaneseq
    %v599 = vshrl.u32 %v598, 7
    %v600 = vsub.s32 0, %v599
    %v601 = vrot.slane %v596, %v600
    %v604 = vsel %vm226, %v594, 0
    %606 = vmatprep.subr.mxu0 0.0
    %607 = vmatpush1.msra.mxu0 %v604
    %608 = vmatprep.subr.mxu0 0.0
    %609 = vmatpush1.msra.mxu0 0.0
    %610 = vmatprep.subr.mxu0 0.0
    %611 = vmatpush1.msra.mxu0 0.0
    %612 = vmatprep.subr.mxu0 0.0
    %613 = vmatpush1.msra.mxu0 0.0
    %614 = vmatprep.subr.mxu0 0.0
    %615 = vmatpush1.msra.mxu0 0.0
    %616 = vmatprep.subr.mxu0 0.0
    %617 = vmatpush1.msra.mxu0 0.0
    %618 = vmatprep.subr.mxu0 0.0
    %619 = vmatpush1.msra.mxu0 0.0
    %620 = vmatprep.subr.mxu0 0.0
    %621 = vmatpush1.msra.mxu0 0.0
    %622 = vmatprep.subr.mxu0 0.0
    %623 = vmatpush1.msra.mxu0 0.0
    %624 = vmatprep.subr.mxu0 0.0
    %625 = vmatpush1.msra.mxu0 0.0
    %626 = vmatprep.subr.mxu0 0.0
    %627 = vmatpush1.msra.mxu0 0.0
    %628 = vmatprep.subr.mxu0 0.0
    %629 = vmatpush1.msra.mxu0 0.0
    %630 = vmatprep.subr.mxu0 0.0
    %631 = vmatpush1.msra.mxu0 0.0
    %632 = vmatprep.subr.mxu0 0.0
    %633 = vmatpush1.msra.mxu0 0.0
    %634 = vmatprep.subr.mxu0 0.0
    %635 = vmatpush1.msra.mxu0 0.0
    %636 = vmatprep.subr.mxu0 0.0
    %637 = vmatpush1.msra.mxu0 0.0
    %638 = vmatprep.subr.mxu0 0.0
    %639 = vmatpush1.msra.mxu0 0.0
    %640 = vmatprep.subr.mxu0 0.0
    %641 = vmatpush1.msra.mxu0 0.0
    %642 = vmatprep.subr.mxu0 0.0
    %643 = vmatpush1.msra.mxu0 0.0
    %644 = vmatprep.subr.mxu0 0.0
    %645 = vmatpush1.msra.mxu0 0.0
    %646 = vmatprep.subr.mxu0 0.0
    %647 = vmatpush1.msra.mxu0 0.0
    %648 = vmatprep.subr.mxu0 0.0
    %649 = vmatpush1.msra.mxu0 0.0
    %650 = vmatprep.subr.mxu0 0.0
    %651 = vmatpush1.msra.mxu0 0.0
    %652 = vmatprep.subr.mxu0 0.0
    %653 = vmatpush1.msra.mxu0 0.0
    %654 = vmatprep.subr.mxu0 0.0
    %655 = vmatpush1.msra.mxu0 0.0
    %656 = vmatprep.subr.mxu0 0.0
    %657 = vmatpush1.msra.mxu0 0.0
    %658 = vmatprep.subr.mxu0 0.0
    %659 = vmatpush1.msra.mxu0 0.0
    %660 = vmatprep.subr.mxu0 0.0
    %661 = vmatpush1.msra.mxu0 0.0
    %662 = vmatprep.subr.mxu0 0.0
    %663 = vmatpush1.msra.mxu0 0.0
    %664 = vmatprep.subr.mxu0 0.0
    %665 = vmatpush1.msra.mxu0 0.0
    %666 = vmatprep.subr.mxu0 0.0
    %667 = vmatpush1.msra.mxu0 0.0
    %668 = vmatprep.subr.mxu0 0.0
    %669 = vmatpush1.msra.mxu0 0.0
    %670 = vmatprep.mubr.f32.mxu0 0.0
    %671 = vmatmul.mubr.f32.gmra.mrb[0].mxu0 %v221
    %v672 = vpop.f32.mrb[0].mxu0
    %v673 = vadd.f32 %v601, %v672
    %v674 = vpop.f32.mrb[0].mxu0
    %675 = vmatprep.mubr.f32.mxu0 0.0
    %676 = vmatmul.mubr.f32.gmra.mrb[0].mxu0 %v224
    %v677 = vpop.f32.mrb[0].mxu0
    %v678 = vadd.f32 %v601, %v677
    %v679 = vpop.f32.mrb[0].mxu0
    %680 = vdwg.mxu0
    %vm681 = vcmp.ge.f32.partialorder %v673, 0.0
    %vm682 = vcmp.ge.f32.partialorder %v678, 0.0
    %v683 = vmul.f32 %v673, 0.01
    %v684 = vmul.f32 %v678, 0.01
    %v685 = vsel %vm681, %v673, %v683
    %v686 = vsel %vm682, %v678, %v684
    %s687 = scalar_lea.vmem %s7, 20
    %v688 = vld [vmem:[%s687] sm:$0x7]
    %s689 = scalar_lea.vmem %s8, 5
    %v690 = vld [vmem:[%s689] sm:$0x1]
    %v692 = vlaneseq
    %v693 = vshrl.u32 %v692, 7
    %v694 = vsub.s32 0, %v693
    %v695 = vrot.slane %v690, %v694
    %v698 = vsel %vm226, %v688, 0
    %700 = vmatprep.subr.mxu0 0.0
    %701 = vmatpush1.msra.mxu0 %v698
    %702 = vmatprep.subr.mxu0 0.0
    %703 = vmatpush1.msra.mxu0 0.0
    %704 = vmatprep.subr.mxu0 0.0
    %705 = vmatpush1.msra.mxu0 0.0
    %706 = vmatprep.subr.mxu0 0.0
    %707 = vmatpush1.msra.mxu0 0.0
    %708 = vmatprep.subr.mxu0 0.0
    %709 = vmatpush1.msra.mxu0 0.0
    %710 = vmatprep.subr.mxu0 0.0
    %711 = vmatpush1.msra.mxu0 0.0
    %712 = vmatprep.subr.mxu0 0.0
    %713 = vmatpush1.msra.mxu0 0.0
    %714 = vmatprep.subr.mxu0 0.0
    %715 = vmatpush1.msra.mxu0 0.0
    %716 = vmatprep.subr.mxu0 0.0
    %717 = vmatpush1.msra.mxu0 0.0
    %718 = vmatprep.subr.mxu0 0.0
    %719 = vmatpush1.msra.mxu0 0.0
    %720 = vmatprep.subr.mxu0 0.0
    %721 = vmatpush1.msra.mxu0 0.0
    %722 = vmatprep.subr.mxu0 0.0
    %723 = vmatpush1.msra.mxu0 0.0
    %724 = vmatprep.subr.mxu0 0.0
    %725 = vmatpush1.msra.mxu0 0.0
    %726 = vmatprep.subr.mxu0 0.0
    %727 = vmatpush1.msra.mxu0 0.0
    %728 = vmatprep.subr.mxu0 0.0
    %729 = vmatpush1.msra.mxu0 0.0
    %730 = vmatprep.subr.mxu0 0.0
    %731 = vmatpush1.msra.mxu0 0.0
    %732 = vmatprep.subr.mxu0 0.0
    %733 = vmatpush1.msra.mxu0 0.0
    %734 = vmatprep.subr.mxu0 0.0
    %735 = vmatpush1.msra.mxu0 0.0
    %736 = vmatprep.subr.mxu0 0.0
    %737 = vmatpush1.msra.mxu0 0.0
    %738 = vmatprep.subr.mxu0 0.0
    %739 = vmatpush1.msra.mxu0 0.0
    %740 = vmatprep.subr.mxu0 0.0
    %741 = vmatpush1.msra.mxu0 0.0
    %742 = vmatprep.subr.mxu0 0.0
    %743 = vmatpush1.msra.mxu0 0.0
    %744 = vmatprep.subr.mxu0 0.0
    %745 = vmatpush1.msra.mxu0 0.0
    %746 = vmatprep.subr.mxu0 0.0
    %747 = vmatpush1.msra.mxu0 0.0
    %748 = vmatprep.subr.mxu0 0.0
    %749 = vmatpush1.msra.mxu0 0.0
    %750 = vmatprep.subr.mxu0 0.0
    %751 = vmatpush1.msra.mxu0 0.0
    %752 = vmatprep.subr.mxu0 0.0
    %753 = vmatpush1.msra.mxu0 0.0
    %754 = vmatprep.subr.mxu0 0.0
    %755 = vmatpush1.msra.mxu0 0.0
    %756 = vmatprep.subr.mxu0 0.0
    %757 = vmatpush1.msra.mxu0 0.0
    %758 = vmatprep.subr.mxu0 0.0
    %759 = vmatpush1.msra.mxu0 0.0
    %760 = vmatprep.subr.mxu0 0.0
    %761 = vmatpush1.msra.mxu0 0.0
    %762 = vmatprep.subr.mxu0 0.0
    %763 = vmatpush1.msra.mxu0 0.0
    %764 = vmatprep.mubr.f32.mxu0 0.0
    %765 = vmatmul.mubr.f32.gmra.mrb[0].mxu0 %v221
    %v766 = vpop.f32.mrb[0].mxu0
    %v767 = vadd.f32 %v695, %v766
    %v768 = vpop.f32.mrb[0].mxu0
    %769 = vmatprep.mubr.f32.mxu0 0.0
    %770 = vmatmul.mubr.f32.gmra.mrb[0].mxu0 %v224
    %v771 = vpop.f32.mrb[0].mxu0
    %v772 = vadd.f32 %v695, %v771
    %v773 = vpop.f32.mrb[0].mxu0
    %774 = vdwg.mxu0
    %vm775 = vcmp.ge.f32.partialorder %v767, 0.0
    %vm776 = vcmp.ge.f32.partialorder %v772, 0.0
    %v777 = vmul.f32 %v767, 0.01
    %v778 = vmul.f32 %v772, 0.01
    %v779 = vsel %vm775, %v767, %v777
    %v780 = vsel %vm776, %v772, %v778
    %s781 = scalar_lea.vmem %s7, 24
    %v782 = vld [vmem:[%s781] sm:$0x7]
    %s783 = scalar_lea.vmem %s8, 6
    %v784 = vld [vmem:[%s783] sm:$0x1]
    %v786 = vlaneseq
    %v787 = vshrl.u32 %v786, 7
    %v788 = vsub.s32 0, %v787
    %v789 = vrot.slane %v784, %v788
    %v792 = vsel %vm226, %v782, 0
    %794 = vmatprep.subr.mxu0 0.0
    %795 = vmatpush1.msra.mxu0 %v792
    %796 = vmatprep.subr.mxu0 0.0
    %797 = vmatpush1.msra.mxu0 0.0
    %798 = vmatprep.subr.mxu0 0.0
    %799 = vmatpush1.msra.mxu0 0.0
    %800 = vmatprep.subr.mxu0 0.0
    %801 = vmatpush1.msra.mxu0 0.0
    %802 = vmatprep.subr.mxu0 0.0
    %803 = vmatpush1.msra.mxu0 0.0
    %804 = vmatprep.subr.mxu0 0.0
    %805 = vmatpush1.msra.mxu0 0.0
    %806 = vmatprep.subr.mxu0 0.0
    %807 = vmatpush1.msra.mxu0 0.0
    %808 = vmatprep.subr.mxu0 0.0
    %809 = vmatpush1.msra.mxu0 0.0
    %810 = vmatprep.subr.mxu0 0.0
    %811 = vmatpush1.msra.mxu0 0.0
    %812 = vmatprep.subr.mxu0 0.0
    %813 = vmatpush1.msra.mxu0 0.0
    %814 = vmatprep.subr.mxu0 0.0
    %815 = vmatpush1.msra.mxu0 0.0
    %816 = vmatprep.subr.mxu0 0.0
    %817 = vmatpush1.msra.mxu0 0.0
    %818 = vmatprep.subr.mxu0 0.0
    %819 = vmatpush1.msra.mxu0 0.0
    %820 = vmatprep.subr.mxu0 0.0
    %821 = vmatpush1.msra.mxu0 0.0
    %822 = vmatprep.subr.mxu0 0.0
    %823 = vmatpush1.msra.mxu0 0.0
    %824 = vmatprep.subr.mxu0 0.0
    %825 = vmatpush1.msra.mxu0 0.0
    %826 = vmatprep.subr.mxu0 0.0
    %827 = vmatpush1.msra.mxu0 0.0
    %828 = vmatprep.subr.mxu0 0.0
    %829 = vmatpush1.msra.mxu0 0.0
    %830 = vmatprep.subr.mxu0 0.0
    %831 = vmatpush1.msra.mxu0 0.0
    %832 = vmatprep.subr.mxu0 0.0
    %833 = vmatpush1.msra.mxu0 0.0
    %834 = vmatprep.subr.mxu0 0.0
    %835 = vmatpush1.msra.mxu0 0.0
    %836 = vmatprep.subr.mxu0 0.0
    %837 = vmatpush1.msra.mxu0 0.0
    %838 = vmatprep.subr.mxu0 0.0
    %839 = vmatpush1.msra.mxu0 0.0
    %840 = vmatprep.subr.mxu0 0.0
    %841 = vmatpush1.msra.mxu0 0.0
    %842 = vmatprep.subr.mxu0 0.0
    %843 = vmatpush1.msra.mxu0 0.0
    %844 = vmatprep.subr.mxu0 0.0
    %845 = vmatpush1.msra.mxu0 0.0
    %846 = vmatprep.subr.mxu0 0.0
    %847 = vmatpush1.msra.mxu0 0.0
    %848 = vmatprep.subr.mxu0 0.0
    %849 = vmatpush1.msra.mxu0 0.0
    %850 = vmatprep.subr.mxu0 0.0
    %851 = vmatpush1.msra.mxu0 0.0
    %852 = vmatprep.subr.mxu0 0.0
    %853 = vmatpush1.msra.mxu0 0.0
    %854 = vmatprep.subr.mxu0 0.0
    %855 = vmatpush1.msra.mxu0 0.0
    %856 = vmatprep.subr.mxu0 0.0
    %857 = vmatpush1.msra.mxu0 0.0
    %858 = vmatprep.mubr.f32.mxu0 0.0
    %859 = vmatmul.mubr.f32.gmra.mrb[0].mxu0 %v221
    %v860 = vpop.f32.mrb[0].mxu0
    %v861 = vadd.f32 %v789, %v860
    %v862 = vpop.f32.mrb[0].mxu0
    %863 = vmatprep.mubr.f32.mxu0 0.0
    %864 = vmatmul.mubr.f32.gmra.mrb[0].mxu0 %v224
    %v865 = vpop.f32.mrb[0].mxu0
    %v866 = vadd.f32 %v789, %v865
    %v867 = vpop.f32.mrb[0].mxu0
    %868 = vdwg.mxu0
    %vm869 = vcmp.ge.f32.partialorder %v861, 0.0
    %vm870 = vcmp.ge.f32.partialorder %v866, 0.0
    %v871 = vmul.f32 %v861, 0.01
    %v872 = vmul.f32 %v866, 0.01
    %v873 = vsel %vm869, %v861, %v871
    %v874 = vsel %vm870, %v866, %v872
    %s875 = scalar_lea.vmem %s7, 28
    %v876 = vld [vmem:[%s875] sm:$0x7]
    %s877 = scalar_lea.vmem %s8, 7
    %v878 = vld [vmem:[%s877] sm:$0x1]
    %v880 = vlaneseq
    %v881 = vshrl.u32 %v880, 7
    %v882 = vsub.s32 0, %v881
    %v883 = vrot.slane %v878, %v882
    %v886 = vsel %vm226, %v876, 0
    %888 = vmatprep.subr.mxu0 0.0
    %889 = vmatpush1.msra.mxu0 %v886
    %890 = vmatprep.subr.mxu0 0.0
    %891 = vmatpush1.msra.mxu0 0.0
    %892 = vmatprep.subr.mxu0 0.0
    %893 = vmatpush1.msra.mxu0 0.0
    %894 = vmatprep.subr.mxu0 0.0
    %895 = vmatpush1.msra.mxu0 0.0
    %896 = vmatprep.subr.mxu0 0.0
    %897 = vmatpush1.msra.mxu0 0.0
    %898 = vmatprep.subr.mxu0 0.0
    %899 = vmatpush1.msra.mxu0 0.0
    %900 = vmatprep.subr.mxu0 0.0
    %901 = vmatpush1.msra.mxu0 0.0
    %902 = vmatprep.subr.mxu0 0.0
    %903 = vmatpush1.msra.mxu0 0.0
    %904 = vmatprep.subr.mxu0 0.0
    %905 = vmatpush1.msra.mxu0 0.0
    %906 = vmatprep.subr.mxu0 0.0
    %907 = vmatpush1.msra.mxu0 0.0
    %908 = vmatprep.subr.mxu0 0.0
    %909 = vmatpush1.msra.mxu0 0.0
    %910 = vmatprep.subr.mxu0 0.0
    %911 = vmatpush1.msra.mxu0 0.0
    %912 = vmatprep.subr.mxu0 0.0
    %913 = vmatpush1.msra.mxu0 0.0
    %914 = vmatprep.subr.mxu0 0.0
    %915 = vmatpush1.msra.mxu0 0.0
    %916 = vmatprep.subr.mxu0 0.0
    %917 = vmatpush1.msra.mxu0 0.0
    %918 = vmatprep.subr.mxu0 0.0
    %919 = vmatpush1.msra.mxu0 0.0
    %920 = vmatprep.subr.mxu0 0.0
    %921 = vmatpush1.msra.mxu0 0.0
    %922 = vmatprep.subr.mxu0 0.0
    %923 = vmatpush1.msra.mxu0 0.0
    %924 = vmatprep.subr.mxu0 0.0
    %925 = vmatpush1.msra.mxu0 0.0
    %926 = vmatprep.subr.mxu0 0.0
    %927 = vmatpush1.msra.mxu0 0.0
    %928 = vmatprep.subr.mxu0 0.0
    %929 = vmatpush1.msra.mxu0 0.0
    %930 = vmatprep.subr.mxu0 0.0
    %931 = vmatpush1.msra.mxu0 0.0
    %932 = vmatprep.subr.mxu0 0.0
    %933 = vmatpush1.msra.mxu0 0.0
    %934 = vmatprep.subr.mxu0 0.0
    %935 = vmatpush1.msra.mxu0 0.0
    %936 = vmatprep.subr.mxu0 0.0
    %937 = vmatpush1.msra.mxu0 0.0
    %938 = vmatprep.subr.mxu0 0.0
    %939 = vmatpush1.msra.mxu0 0.0
    %940 = vmatprep.subr.mxu0 0.0
    %941 = vmatpush1.msra.mxu0 0.0
    %942 = vmatprep.subr.mxu0 0.0
    %943 = vmatpush1.msra.mxu0 0.0
    %944 = vmatprep.subr.mxu0 0.0
    %945 = vmatpush1.msra.mxu0 0.0
    %946 = vmatprep.subr.mxu0 0.0
    %947 = vmatpush1.msra.mxu0 0.0
    %948 = vmatprep.subr.mxu0 0.0
    %949 = vmatpush1.msra.mxu0 0.0
    %950 = vmatprep.subr.mxu0 0.0
    %951 = vmatpush1.msra.mxu0 0.0
    %952 = vmatprep.mubr.f32.mxu0 0.0
    %953 = vmatmul.mubr.f32.gmra.mrb[0].mxu0 %v221
    %v954 = vpop.f32.mrb[0].mxu0
    %v955 = vadd.f32 %v883, %v954
    %v956 = vpop.f32.mrb[0].mxu0
    %957 = vmatprep.mubr.f32.mxu0 0.0
    %958 = vmatmul.mubr.f32.gmra.mrb[0].mxu0 %v224
    %v959 = vpop.f32.mrb[0].mxu0
    %v960 = vadd.f32 %v883, %v959
    %v961 = vpop.f32.mrb[0].mxu0
    %962 = vdwg.mxu0
    %vm963 = vcmp.ge.f32.partialorder %v955, 0.0
    %vm964 = vcmp.ge.f32.partialorder %v960, 0.0
    %v965 = vmul.f32 %v955, 0.01
    %v966 = vmul.f32 %v960, 0.01
    %v967 = vsel %vm963, %v955, %v965
    %v968 = vsel %vm964, %v960, %v966
    %v969 = vld [vmem:[%s0] sm:$0xff]
    %v970 = vld [vmem:[%s0 + $0x8] sm:$0xff]
    %v971 = vlaneseq
    %v972 = vand.u32 %v971, 127
    %973 = vset.pattern.permute.xlu0 0
    %974 = vperm.xlu0 %973, %v969
    %v975 = vpop.permute.xlu0 %974
    %976 = vset.pattern.permute.xlu0 0
    %977 = vperm.xlu0 %976, %v970
    %v978 = vpop.permute.xlu0 %977
    %vm979 = vcmp.eq.s32.totalorder %v975, %v972
    %vm980 = vcmp.eq.s32.totalorder %v978, %v972
    %v981 = vsel %vm979, 1, 0
    %v982 = vsel %vm980, 1, 0
    %v983 = vcvt.s32.f32 %v981
    %v984 = vcvt.s32.f32 %v982
    %v985 = vlaneseq
    %v986 = vshrl.u32 %v985, 7
    %v987 = vld [vmem:[%s1] sm:$0x1]
    %v988 = vlaneseq
    %v989 = vshrl.u32 %v988, 7
    %v990 = vsub.s32 0, %v989
    %v991 = vrot.slane %v987, %v990
    %vm992 = vcmp.eq.s32.totalorder %v986, %v991
    %v993 = vsel %vm992, 1, 0
    %v994 = vcvt.s32.f32 %v993
    %vm995 = vcmp.ge.f32.partialorder %v206, 0.0
    %v996 = vmul.f32 %v206, 0.01
    %v997 = vsel %vm995, %v206, %v996
    %v999 = vsel %vm135, %v983, 0
    %v1002 = vsel %vm135, %v984, 0
    %1004 = vmatprep.subr.mxu0 0.0
    %1005 = vmatpush1.msra.mxu0 %v997
    %1006 = vmatprep.subr.mxu0 0.0
    %1007 = vmatpush1.msra.mxu0 0.0
    %1008 = vmatprep.subr.mxu0 0.0
    %1009 = vmatpush1.msra.mxu0 0.0
    %1010 = vmatprep.subr.mxu0 0.0
    %1011 = vmatpush1.msra.mxu0 0.0
    %1012 = vmatprep.subr.mxu0 0.0
    %1013 = vmatpush1.msra.mxu0 0.0
    %1014 = vmatprep.subr.mxu0 0.0
    %1015 = vmatpush1.msra.mxu0 0.0
    %1016 = vmatprep.subr.mxu0 0.0
    %1017 = vmatpush1.msra.mxu0 0.0
    %1018 = vmatprep.subr.mxu0 0.0
    %1019 = vmatpush1.msra.mxu0 0.0
    %1020 = vmatprep.subr.mxu0 0.0
    %1021 = vmatpush1.msra.mxu0 0.0
    %1022 = vmatprep.subr.mxu0 0.0
    %1023 = vmatpush1.msra.mxu0 0.0
    %1024 = vmatprep.subr.mxu0 0.0
    %1025 = vmatpush1.msra.mxu0 0.0
    %1026 = vmatprep.subr.mxu0 0.0
    %1027 = vmatpush1.msra.mxu0 0.0
    %1028 = vmatprep.subr.mxu0 0.0
    %1029 = vmatpush1.msra.mxu0 0.0
    %1030 = vmatprep.subr.mxu0 0.0
    %1031 = vmatpush1.msra.mxu0 0.0
    %1032 = vmatprep.subr.mxu0 0.0
    %1033 = vmatpush1.msra.mxu0 0.0
    %1034 = vmatprep.subr.mxu0 0.0
    %1035 = vmatpush1.msra.mxu0 0.0
    %1036 = vmatprep.subr.mxu0 0.0
    %1037 = vmatpush1.msra.mxu0 0.0
    %1038 = vmatprep.subr.mxu0 0.0
    %1039 = vmatpush1.msra.mxu0 0.0
    %1040 = vmatprep.subr.mxu0 0.0
    %1041 = vmatpush1.msra.mxu0 0.0
    %1042 = vmatprep.subr.mxu0 0.0
    %1043 = vmatpush1.msra.mxu0 0.0
    %1044 = vmatprep.subr.mxu0 0.0
    %1045 = vmatpush1.msra.mxu0 0.0
    %1046 = vmatprep.subr.mxu0 0.0
    %1047 = vmatpush1.msra.mxu0 0.0
    %1048 = vmatprep.subr.mxu0 0.0
    %1049 = vmatpush1.msra.mxu0 0.0
    %1050 = vmatprep.subr.mxu0 0.0
    %1051 = vmatpush1.msra.mxu0 0.0
    %1052 = vmatprep.subr.mxu0 0.0
    %1053 = vmatpush1.msra.mxu0 0.0
    %1054 = vmatprep.subr.mxu0 0.0
    %1055 = vmatpush1.msra.mxu0 0.0
    %1056 = vmatprep.subr.mxu0 0.0
    %1057 = vmatpush1.msra.mxu0 0.0
    %1058 = vmatprep.subr.mxu0 0.0
    %1059 = vmatpush1.msra.mxu0 0.0
    %1060 = vmatprep.subr.mxu0 0.0
    %1061 = vmatpush1.msra.mxu0 0.0
    %1062 = vmatprep.subr.mxu0 0.0
    %1063 = vmatpush1.msra.mxu0 0.0
    %1064 = vmatprep.subr.mxu0 0.0
    %1065 = vmatpush1.msra.mxu0 0.0
    %1066 = vmatprep.subr.mxu0 0.0
    %1067 = vmatpush1.msra.mxu0 0.0
    %1068 = vmatprep.mubr.f32.mxu0 0.0
    %1069 = vmatmul.mubr.f32.gmra.mrb[0].mxu0 %v999
    %v1070 = vpop.f32.mrb[0].mxu0
    %v1071 = vadd.f32 0.0, %v1070
    %v1072 = vpop.f32.mrb[0].mxu0
    %1073 = vmatprep.mubr.f32.mxu0 0.0
    %1074 = vmatmul.mubr.f32.gmra.mrb[0].mxu0 %v1002
    %v1075 = vpop.f32.mrb[0].mxu0
    %v1076 = vadd.f32 0.0, %v1075
    %v1077 = vpop.f32.mrb[0].mxu0
    %1078 = vdwg.mxu0
    %1080 = vset.pattern.permute.xlu0 0
    %1081 = vperm.xlu0 %1080, %v1071
    %v1082 = vpop.permute.xlu0 %1081
    %1085 = vset.pattern.permute.xlu0 0
    %1086 = vperm.xlu0 %1085, %v1076
    %v1087 = vpop.permute.xlu0 %1086
    %v1089 = vmul.f32 %v1082, %v309
    %v1090 = vmul.f32 %v1087, %v310
    %v1091 = vadd.f32 %v1089, 0.0
    %v1092 = vadd.f32 %v1090, 0.0
    %1093 = vset.pattern.permute.xlu0 1
    %1094 = vperm.xlu0 %1093, %v1071
    %v1095 = vpop.permute.xlu0 %1094
    %1097 = vset.pattern.permute.xlu0 1
    %1098 = vperm.xlu0 %1097, %v1076
    %v1099 = vpop.permute.xlu0 %1098
    %v1101 = vmul.f32 %v1095, %v403
    %v1102 = vmul.f32 %v1099, %v404
    %v1103 = vadd.f32 %v1091, %v1101
    %v1104 = vadd.f32 %v1092, %v1102
    %1105 = vset.pattern.permute.xlu0 2
    %1106 = vperm.xlu0 %1105, %v1071
    %v1107 = vpop.permute.xlu0 %1106
    %1109 = vset.pattern.permute.xlu0 2
    %1110 = vperm.xlu0 %1109, %v1076
    %v1111 = vpop.permute.xlu0 %1110
    %v1113 = vmul.f32 %v1107, %v497
    %v1114 = vmul.f32 %v1111, %v498
    %v1115 = vadd.f32 %v1103, %v1113
    %v1116 = vadd.f32 %v1104, %v1114
    %1117 = vset.pattern.permute.xlu0 3
    %1118 = vperm.xlu0 %1117, %v1071
    %v1119 = vpop.permute.xlu0 %1118
    %1121 = vset.pattern.permute.xlu0 3
    %1122 = vperm.xlu0 %1121, %v1076
    %v1123 = vpop.permute.xlu0 %1122
    %v1125 = vmul.f32 %v1119, %v591
    %v1126 = vmul.f32 %v1123, %v592
    %v1127 = vadd.f32 %v1115, %v1125
    %v1128 = vadd.f32 %v1116, %v1126
    %1129 = vset.pattern.permute.xlu0 4
    %1130 = vperm.xlu0 %1129, %v1071
    %v1131 = vpop.permute.xlu0 %1130
    %1133 = vset.pattern.permute.xlu0 4
    %1134 = vperm.xlu0 %1133, %v1076
    %v1135 = vpop.permute.xlu0 %1134
    %v1137 = vmul.f32 %v1131, %v685
    %v1138 = vmul.f32 %v1135, %v686
    %v1139 = vadd.f32 %v1127, %v1137
    %v1140 = vadd.f32 %v1128, %v1138
    %1141 = vset.pattern.permute.xlu0 5
    %1142 = vperm.xlu0 %1141, %v1071
    %v1143 = vpop.permute.xlu0 %1142
    %1145 = vset.pattern.permute.xlu0 5
    %1146 = vperm.xlu0 %1145, %v1076
    %v1147 = vpop.permute.xlu0 %1146
    %v1149 = vmul.f32 %v1143, %v779
    %v1150 = vmul.f32 %v1147, %v780
    %v1151 = vadd.f32 %v1139, %v1149
    %v1152 = vadd.f32 %v1140, %v1150
    %1153 = vset.pattern.permute.xlu0 6
    %1154 = vperm.xlu0 %1153, %v1071
    %v1155 = vpop.permute.xlu0 %1154
    %1157 = vset.pattern.permute.xlu0 6
    %1158 = vperm.xlu0 %1157, %v1076
    %v1159 = vpop.permute.xlu0 %1158
    %v1161 = vmul.f32 %v1155, %v873
    %v1162 = vmul.f32 %v1159, %v874
    %v1163 = vadd.f32 %v1151, %v1161
    %v1164 = vadd.f32 %v1152, %v1162
    %1165 = vset.pattern.permute.xlu0 7
    %1166 = vperm.xlu0 %1165, %v1071
    %v1167 = vpop.permute.xlu0 %1166
    %1169 = vset.pattern.permute.xlu0 7
    %1170 = vperm.xlu0 %1169, %v1076
    %v1171 = vpop.permute.xlu0 %1170
    %v1173 = vmul.f32 %v1167, %v967
    %v1174 = vmul.f32 %v1171, %v968
    %v1175 = vadd.f32 %v1163, %v1173
    %v1176 = vadd.f32 %v1164, %v1174
    %s1177 = scalar_lea.vmem %s5, 8
    %v1178 = vld [vmem:[%s1177] sm:$0xff]
    %v1179 = vld [vmem:[%s6 + $0x2] sm:$0x1]
    %v1181 = vsel %vm135, %v997, 0
    %1183 = vmatprep.subr.mxu0 0.0
    %1184 = vmatpush1.msra.mxu0 %v1178
    %1185 = vmatprep.subr.mxu0 0.0
    %1186 = vmatpush1.msra.mxu0 0.0
    %1187 = vmatprep.subr.mxu0 0.0
    %1188 = vmatpush1.msra.mxu0 0.0
    %1189 = vmatprep.subr.mxu0 0.0
    %1190 = vmatpush1.msra.mxu0 0.0
    %1191 = vmatprep.subr.mxu0 0.0
    %1192 = vmatpush1.msra.mxu0 0.0
    %1193 = vmatprep.subr.mxu0 0.0
    %1194 = vmatpush1.msra.mxu0 0.0
    %1195 = vmatprep.subr.mxu0 0.0
    %1196 = vmatpush1.msra.mxu0 0.0
    %1197 = vmatprep.subr.mxu0 0.0
    %1198 = vmatpush1.msra.mxu0 0.0
    %1199 = vmatprep.subr.mxu0 0.0
    %1200 = vmatpush1.msra.mxu0 0.0
    %1201 = vmatprep.subr.mxu0 0.0
    %1202 = vmatpush1.msra.mxu0 0.0
    %1203 = vmatprep.subr.mxu0 0.0
    %1204 = vmatpush1.msra.mxu0 0.0
    %1205 = vmatprep.subr.mxu0 0.0
    %1206 = vmatpush1.msra.mxu0 0.0
    %1207 = vmatprep.subr.mxu0 0.0
    %1208 = vmatpush1.msra.mxu0 0.0
    %1209 = vmatprep.subr.mxu0 0.0
    %1210 = vmatpush1.msra.mxu0 0.0
    %1211 = vmatprep.subr.mxu0 0.0
    %1212 = vmatpush1.msra.mxu0 0.0
    %1213 = vmatprep.subr.mxu0 0.0
    %1214 = vmatpush1.msra.mxu0 0.0
    %1215 = vmatprep.subr.mxu0 0.0
    %1216 = vmatpush1.msra.mxu0 0.0
    %1217 = vmatprep.subr.mxu0 0.0
    %1218 = vmatpush1.msra.mxu0 0.0
    %1219 = vmatprep.subr.mxu0 0.0
    %1220 = vmatpush1.msra.mxu0 0.0
    %1221 = vmatprep.subr.mxu0 0.0
    %1222 = vmatpush1.msra.mxu0 0.0
    %1223 = vmatprep.subr.mxu0 0.0
    %1224 = vmatpush1.msra.mxu0 0.0
    %1225 = vmatprep.subr.mxu0 0.0
    %1226 = vmatpush1.msra.mxu0 0.0
    %1227 = vmatprep.subr.mxu0 0.0
    %1228 = vmatpush1.msra.mxu0 0.0
    %1229 = vmatprep.subr.mxu0 0.0
    %1230 = vmatpush1.msra.mxu0 0.0
    %1231 = vmatprep.subr.mxu0 0.0
    %1232 = vmatpush1.msra.mxu0 0.0
    %1233 = vmatprep.subr.mxu0 0.0
    %1234 = vmatpush1.msra.mxu0 0.0
    %1235 = vmatprep.subr.mxu0 0.0
    %1236 = vmatpush1.msra.mxu0 0.0
    %1237 = vmatprep.subr.mxu0 0.0
    %1238 = vmatpush1.msra.mxu0 0.0
    %1239 = vmatprep.subr.mxu0 0.0
    %1240 = vmatpush1.msra.mxu0 0.0
    %1241 = vmatprep.subr.mxu0 0.0
    %1242 = vmatpush1.msra.mxu0 0.0
    %1243 = vmatprep.subr.mxu0 0.0
    %1244 = vmatpush1.msra.mxu0 0.0
    %1245 = vmatprep.subr.mxu0 0.0
    %1246 = vmatpush1.msra.mxu0 0.0
    %1247 = vmatprep.mubr.f32.mxu0 0.0
    %1248 = vmatmul.mubr.f32.gmra.mrb[0].mxu0 %v1181
    %v1249 = vpop.f32.mrb[0].mxu0
    %v1250 = vadd.f32 0.0, %v1249
    %v1251 = vpop.f32.mrb[0].mxu0
    %1252 = vdwg.mxu0
    %vm1253 = vcmask 130048
    %v1255 = vsel %vm1253, %v994, 0
    %1257 = vmatprep.subr.mxu0 0.0
    %1258 = vmatpush1.msra.mxu0 %v1175
    %1259 = vmatprep.subr.mxu0 0.0
    %1260 = vmatpush1.msra.mxu0 %v1176
    %1261 = vmatprep.subr.mxu0 0.0
    %1262 = vmatpush1.msra.mxu0 0.0
    %1263 = vmatprep.subr.mxu0 0.0
    %1264 = vmatpush1.msra.mxu0 0.0
    %1265 = vmatprep.subr.mxu0 0.0
    %1266 = vmatpush1.msra.mxu0 0.0
    %1267 = vmatprep.subr.mxu0 0.0
    %1268 = vmatpush1.msra.mxu0 0.0
    %1269 = vmatprep.subr.mxu0 0.0
    %1270 = vmatpush1.msra.mxu0 0.0
    %1271 = vmatprep.subr.mxu0 0.0
    %1272 = vmatpush1.msra.mxu0 0.0
    %1273 = vmatprep.subr.mxu0 0.0
    %1274 = vmatpush1.msra.mxu0 0.0
    %1275 = vmatprep.subr.mxu0 0.0
    %1276 = vmatpush1.msra.mxu0 0.0
    %1277 = vmatprep.subr.mxu0 0.0
    %1278 = vmatpush1.msra.mxu0 0.0
    %1279 = vmatprep.subr.mxu0 0.0
    %1280 = vmatpush1.msra.mxu0 0.0
    %1281 = vmatprep.subr.mxu0 0.0
    %1282 = vmatpush1.msra.mxu0 0.0
    %1283 = vmatprep.subr.mxu0 0.0
    %1284 = vmatpush1.msra.mxu0 0.0
    %1285 = vmatprep.subr.mxu0 0.0
    %1286 = vmatpush1.msra.mxu0 0.0
    %1287 = vmatprep.subr.mxu0 0.0
    %1288 = vmatpush1.msra.mxu0 0.0
    %1289 = vmatprep.subr.mxu0 0.0
    %1290 = vmatpush1.msra.mxu0 0.0
    %1291 = vmatprep.subr.mxu0 0.0
    %1292 = vmatpush1.msra.mxu0 0.0
    %1293 = vmatprep.subr.mxu0 0.0
    %1294 = vmatpush1.msra.mxu0 0.0
    %1295 = vmatprep.subr.mxu0 0.0
    %1296 = vmatpush1.msra.mxu0 0.0
    %1297 = vmatprep.subr.mxu0 0.0
    %1298 = vmatpush1.msra.mxu0 0.0
    %1299 = vmatprep.subr.mxu0 0.0
    %1300 = vmatpush1.msra.mxu0 0.0
    %1301 = vmatprep.subr.mxu0 0.0
    %1302 = vmatpush1.msra.mxu0 0.0
    %1303 = vmatprep.subr.mxu0 0.0
    %1304 = vmatpush1.msra.mxu0 0.0
    %1305 = vmatprep.subr.mxu0 0.0
    %1306 = vmatpush1.msra.mxu0 0.0
    %1307 = vmatprep.subr.mxu0 0.0
    %1308 = vmatpush1.msra.mxu0 0.0
    %1309 = vmatprep.subr.mxu0 0.0
    %1310 = vmatpush1.msra.mxu0 0.0
    %1311 = vmatprep.subr.mxu0 0.0
    %1312 = vmatpush1.msra.mxu0 0.0
    %1313 = vmatprep.subr.mxu0 0.0
    %1314 = vmatpush1.msra.mxu0 0.0
    %1315 = vmatprep.subr.mxu0 0.0
    %1316 = vmatpush1.msra.mxu0 0.0
    %1317 = vmatprep.subr.mxu0 0.0
    %1318 = vmatpush1.msra.mxu0 0.0
    %1319 = vmatprep.subr.mxu0 0.0
    %1320 = vmatpush1.msra.mxu0 0.0
    %1321 = vmatprep.mubr.f32.mxu0 0.0
    %1322 = vmatmul.mubr.f32.gmra.mrb[0].mxu0 %v1255
    %v1323 = vpop.f32.mrb[0].mxu0
    %v1324 = vadd.f32 %v1250, %v1323
    %v1325 = vpop.f32.mrb[0].mxu0
    %1326 = vdwg.mxu0
    %v1327 = vlaneseq
    %v1328 = vshrl.u32 %v1327, 7
    %v1329 = vsub.s32 0, %v1328
    %v1330 = vrot.slane %v1179, %v1329
    %v1331 = vadd.f32 %v1324, %v1330
    %vm1332 = vcmp.ge.f32.partialorder %v1331, 0.0
    %v1333 = vmul.f32 %v1331, 0.01
    %v1334 = vsel %vm1332, %v1331, %v1333
    %1335 = vmatprep.subr.mxu0 0.0
    %1336 = vmatpush1.msra.mxu0 %v1334
    %1337 = vmatprep.subr.mxu0 0.0
    %1338 = vmatpush1.msra.mxu0 0.0
    %1339 = vmatprep.subr.mxu0 0.0
    %1340 = vmatpush1.msra.mxu0 0.0
    %1341 = vmatprep.subr.mxu0 0.0
    %1342 = vmatpush1.msra.mxu0 0.0
    %1343 = vmatprep.subr.mxu0 0.0
    %1344 = vmatpush1.msra.mxu0 0.0
    %1345 = vmatprep.subr.mxu0 0.0
    %1346 = vmatpush1.msra.mxu0 0.0
    %1347 = vmatprep.subr.mxu0 0.0
    %1348 = vmatpush1.msra.mxu0 0.0
    %1349 = vmatprep.subr.mxu0 0.0
    %1350 = vmatpush1.msra.mxu0 0.0
    %1351 = vmatprep.subr.mxu0 0.0
    %1352 = vmatpush1.msra.mxu0 0.0
    %1353 = vmatprep.subr.mxu0 0.0
    %1354 = vmatpush1.msra.mxu0 0.0
    %1355 = vmatprep.subr.mxu0 0.0
    %1356 = vmatpush1.msra.mxu0 0.0
    %1357 = vmatprep.subr.mxu0 0.0
    %1358 = vmatpush1.msra.mxu0 0.0
    %1359 = vmatprep.subr.mxu0 0.0
    %1360 = vmatpush1.msra.mxu0 0.0
    %1361 = vmatprep.subr.mxu0 0.0
    %1362 = vmatpush1.msra.mxu0 0.0
    %1363 = vmatprep.subr.mxu0 0.0
    %1364 = vmatpush1.msra.mxu0 0.0
    %1365 = vmatprep.subr.mxu0 0.0
    %1366 = vmatpush1.msra.mxu0 0.0
    %1367 = vmatprep.subr.mxu0 0.0
    %1368 = vmatpush1.msra.mxu0 0.0
    %1369 = vmatprep.subr.mxu0 0.0
    %1370 = vmatpush1.msra.mxu0 0.0
    %1371 = vmatprep.subr.mxu0 0.0
    %1372 = vmatpush1.msra.mxu0 0.0
    %1373 = vmatprep.subr.mxu0 0.0
    %1374 = vmatpush1.msra.mxu0 0.0
    %1375 = vmatprep.subr.mxu0 0.0
    %1376 = vmatpush1.msra.mxu0 0.0
    %1377 = vmatprep.subr.mxu0 0.0
    %1378 = vmatpush1.msra.mxu0 0.0
    %1379 = vmatprep.subr.mxu0 0.0
    %1380 = vmatpush1.msra.mxu0 0.0
    %1381 = vmatprep.subr.mxu0 0.0
    %1382 = vmatpush1.msra.mxu0 0.0
    %1383 = vmatprep.subr.mxu0 0.0
    %1384 = vmatpush1.msra.mxu0 0.0
    %1385 = vmatprep.subr.mxu0 0.0
    %1386 = vmatpush1.msra.mxu0 0.0
    %1387 = vmatprep.subr.mxu0 0.0
    %1388 = vmatpush1.msra.mxu0 0.0
    %1389 = vmatprep.subr.mxu0 0.0
    %1390 = vmatpush1.msra.mxu0 0.0
    %1391 = vmatprep.subr.mxu0 0.0
    %1392 = vmatpush1.msra.mxu0 0.0
    %1393 = vmatprep.subr.mxu0 0.0
    %1394 = vmatpush1.msra.mxu0 0.0
    %1395 = vmatprep.subr.mxu0 0.0
    %1396 = vmatpush1.msra.mxu0 0.0
    %1397 = vmatprep.subr.mxu0 0.0
    %1398 = vmatpush1.msra.mxu0 0.0
    %1399 = vmatprep.mubr.f32.mxu0 0.0
    %1400 = vmatmul.mubr.f32.gmra.mrb[0].mxu0 %v999
    %v1401 = vpop.f32.mrb[0].mxu0
    %v1402 = vadd.f32 0.0, %v1401
    %v1403 = vpop.f32.mrb[0].mxu0
    %1404 = vmatprep.mubr.f32.mxu0 0.0
    %1405 = vmatmul.mubr.f32.gmra.mrb[0].mxu0 %v1002
    %v1406 = vpop.f32.mrb[0].mxu0
    %v1407 = vadd.f32 0.0, %v1406
    %v1408 = vpop.f32.mrb[0].mxu0
    %1409 = vdwg.mxu0
    %1411 = vset.pattern.permute.xlu0 0
    %1412 = vperm.xlu0 %1411, %v1402
    %v1413 = vpop.permute.xlu0 %1412
    %1416 = vset.pattern.permute.xlu0 0
    %1417 = vperm.xlu0 %1416, %v1407
    %v1418 = vpop.permute.xlu0 %1417
    %v1420 = vmul.f32 %v1413, %v309
    %v1421 = vmul.f32 %v1418, %v310
    %v1422 = vadd.f32 %v1420, 0.0
    %v1423 = vadd.f32 %v1421, 0.0
    %1424 = vset.pattern.permute.xlu0 1
    %1425 = vperm.xlu0 %1424, %v1402
    %v1426 = vpop.permute.xlu0 %1425
    %1428 = vset.pattern.permute.xlu0 1
    %1429 = vperm.xlu0 %1428, %v1407
    %v1430 = vpop.permute.xlu0 %1429
    %v1432 = vmul.f32 %v1426, %v403
    %v1433 = vmul.f32 %v1430, %v404
    %v1434 = vadd.f32 %v1422, %v1432
    %v1435 = vadd.f32 %v1423, %v1433
    %1436 = vset.pattern.permute.xlu0 2
    %1437 = vperm.xlu0 %1436, %v1402
    %v1438 = vpop.permute.xlu0 %1437
    %1440 = vset.pattern.permute.xlu0 2
    %1441 = vperm.xlu0 %1440, %v1407
    %v1442 = vpop.permute.xlu0 %1441
    %v1444 = vmul.f32 %v1438, %v497
    %v1445 = vmul.f32 %v1442, %v498
    %v1446 = vadd.f32 %v1434, %v1444
    %v1447 = vadd.f32 %v1435, %v1445
    %1448 = vset.pattern.permute.xlu0 3
    %1449 = vperm.xlu0 %1448, %v1402
    %v1450 = vpop.permute.xlu0 %1449
    %1452 = vset.pattern.permute.xlu0 3
    %1453 = vperm.xlu0 %1452, %v1407
    %v1454 = vpop.permute.xlu0 %1453
    %v1456 = vmul.f32 %v1450, %v591
    %v1457 = vmul.f32 %v1454, %v592
    %v1458 = vadd.f32 %v1446, %v1456
    %v1459 = vadd.f32 %v1447, %v1457
    %1460 = vset.pattern.permute.xlu0 4
    %1461 = vperm.xlu0 %1460, %v1402
    %v1462 = vpop.permute.xlu0 %1461
    %1464 = vset.pattern.permute.xlu0 4
    %1465 = vperm.xlu0 %1464, %v1407
    %v1466 = vpop.permute.xlu0 %1465
    %v1468 = vmul.f32 %v1462, %v685
    %v1469 = vmul.f32 %v1466, %v686
    %v1470 = vadd.f32 %v1458, %v1468
    %v1471 = vadd.f32 %v1459, %v1469
    %1472 = vset.pattern.permute.xlu0 5
    %1473 = vperm.xlu0 %1472, %v1402
    %v1474 = vpop.permute.xlu0 %1473
    %1476 = vset.pattern.permute.xlu0 5
    %1477 = vperm.xlu0 %1476, %v1407
    %v1478 = vpop.permute.xlu0 %1477
    %v1480 = vmul.f32 %v1474, %v779
    %v1481 = vmul.f32 %v1478, %v780
    %v1482 = vadd.f32 %v1470, %v1480
    %v1483 = vadd.f32 %v1471, %v1481
    %1484 = vset.pattern.permute.xlu0 6
    %1485 = vperm.xlu0 %1484, %v1402
    %v1486 = vpop.permute.xlu0 %1485
    %1488 = vset.pattern.permute.xlu0 6
    %1489 = vperm.xlu0 %1488, %v1407
    %v1490 = vpop.permute.xlu0 %1489
    %v1492 = vmul.f32 %v1486, %v873
    %v1493 = vmul.f32 %v1490, %v874
    %v1494 = vadd.f32 %v1482, %v1492
    %v1495 = vadd.f32 %v1483, %v1493
    %1496 = vset.pattern.permute.xlu0 7
    %1497 = vperm.xlu0 %1496, %v1402
    %v1498 = vpop.permute.xlu0 %1497
    %1500 = vset.pattern.permute.xlu0 7
    %1501 = vperm.xlu0 %1500, %v1407
    %v1502 = vpop.permute.xlu0 %1501
    %v1504 = vmul.f32 %v1498, %v967
    %v1505 = vmul.f32 %v1502, %v968
    %v1506 = vadd.f32 %v1494, %v1504
    %v1507 = vadd.f32 %v1495, %v1505
    %s1508 = scalar_lea.vmem %s5, 16
    %v1509 = vld [vmem:[%s1508] sm:$0xff]
    %v1510 = vld [vmem:[%s6 + $0x3] sm:$0x1]
    %v1512 = vsel %vm135, %v1334, 0
    %1514 = vmatprep.subr.mxu0 0.0
    %1515 = vmatpush1.msra.mxu0 %v1509
    %1516 = vmatprep.subr.mxu0 0.0
    %1517 = vmatpush1.msra.mxu0 0.0
    %1518 = vmatprep.subr.mxu0 0.0
    %1519 = vmatpush1.msra.mxu0 0.0
    %1520 = vmatprep.subr.mxu0 0.0
    %1521 = vmatpush1.msra.mxu0 0.0
    %1522 = vmatprep.subr.mxu0 0.0
    %1523 = vmatpush1.msra.mxu0 0.0
    %1524 = vmatprep.subr.mxu0 0.0
    %1525 = vmatpush1.msra.mxu0 0.0
    %1526 = vmatprep.subr.mxu0 0.0
    %1527 = vmatpush1.msra.mxu0 0.0
    %1528 = vmatprep.subr.mxu0 0.0
    %1529 = vmatpush1.msra.mxu0 0.0
    %1530 = vmatprep.subr.mxu0 0.0
    %1531 = vmatpush1.msra.mxu0 0.0
    %1532 = vmatprep.subr.mxu0 0.0
    %1533 = vmatpush1.msra.mxu0 0.0
    %1534 = vmatprep.subr.mxu0 0.0
    %1535 = vmatpush1.msra.mxu0 0.0
    %1536 = vmatprep.subr.mxu0 0.0
    %1537 = vmatpush1.msra.mxu0 0.0
    %1538 = vmatprep.subr.mxu0 0.0
    %1539 = vmatpush1.msra.mxu0 0.0
    %1540 = vmatprep.subr.mxu0 0.0
    %1541 = vmatpush1.msra.mxu0 0.0
    %1542 = vmatprep.subr.mxu0 0.0
    %1543 = vmatpush1.msra.mxu0 0.0
    %1544 = vmatprep.subr.mxu0 0.0
    %1545 = vmatpush1.msra.mxu0 0.0
    %1546 = vmatprep.subr.mxu0 0.0
    %1547 = vmatpush1.msra.mxu0 0.0
    %1548 = vmatprep.subr.mxu0 0.0
    %1549 = vmatpush1.msra.mxu0 0.0
    %1550 = vmatprep.subr.mxu0 0.0
    %1551 = vmatpush1.msra.mxu0 0.0
    %1552 = vmatprep.subr.mxu0 0.0
    %1553 = vmatpush1.msra.mxu0 0.0
    %1554 = vmatprep.subr.mxu0 0.0
    %1555 = vmatpush1.msra.mxu0 0.0
    %1556 = vmatprep.subr.mxu0 0.0
    %1557 = vmatpush1.msra.mxu0 0.0
    %1558 = vmatprep.subr.mxu0 0.0
    %1559 = vmatpush1.msra.mxu0 0.0
    %1560 = vmatprep.subr.mxu0 0.0
    %1561 = vmatpush1.msra.mxu0 0.0
    %1562 = vmatprep.subr.mxu0 0.0
    %1563 = vmatpush1.msra.mxu0 0.0
    %1564 = vmatprep.subr.mxu0 0.0
    %1565 = vmatpush1.msra.mxu0 0.0
    %1566 = vmatprep.subr.mxu0 0.0
    %1567 = vmatpush1.msra.mxu0 0.0
    %1568 = vmatprep.subr.mxu0 0.0
    %1569 = vmatpush1.msra.mxu0 0.0
    %1570 = vmatprep.subr.mxu0 0.0
    %1571 = vmatpush1.msra.mxu0 0.0
    %1572 = vmatprep.subr.mxu0 0.0
    %1573 = vmatpush1.msra.mxu0 0.0
    %1574 = vmatprep.subr.mxu0 0.0
    %1575 = vmatpush1.msra.mxu0 0.0
    %1576 = vmatprep.subr.mxu0 0.0
    %1577 = vmatpush1.msra.mxu0 0.0
    %1578 = vmatprep.mubr.f32.mxu0 0.0
    %1579 = vmatmul.mubr.f32.gmra.mrb[0].mxu0 %v1512
    %v1580 = vpop.f32.mrb[0].mxu0
    %v1581 = vadd.f32 0.0, %v1580
    %v1582 = vpop.f32.mrb[0].mxu0
    %1583 = vdwg.mxu0
    %1584 = vmatprep.subr.mxu0 0.0
    %1585 = vmatpush1.msra.mxu0 %v1506
    %1586 = vmatprep.subr.mxu0 0.0
    %1587 = vmatpush1.msra.mxu0 %v1507
    %1588 = vmatprep.subr.mxu0 0.0
    %1589 = vmatpush1.msra.mxu0 0.0
    %1590 = vmatprep.subr.mxu0 0.0
    %1591 = vmatpush1.msra.mxu0 0.0
    %1592 = vmatprep.subr.mxu0 0.0
    %1593 = vmatpush1.msra.mxu0 0.0
    %1594 = vmatprep.subr.mxu0 0.0
    %1595 = vmatpush1.msra.mxu0 0.0
    %1596 = vmatprep.subr.mxu0 0.0
    %1597 = vmatpush1.msra.mxu0 0.0
    %1598 = vmatprep.subr.mxu0 0.0
    %1599 = vmatpush1.msra.mxu0 0.0
    %1600 = vmatprep.subr.mxu0 0.0
    %1601 = vmatpush1.msra.mxu0 0.0
    %1602 = vmatprep.subr.mxu0 0.0
    %1603 = vmatpush1.msra.mxu0 0.0
    %1604 = vmatprep.subr.mxu0 0.0
    %1605 = vmatpush1.msra.mxu0 0.0
    %1606 = vmatprep.subr.mxu0 0.0
    %1607 = vmatpush1.msra.mxu0 0.0
    %1608 = vmatprep.subr.mxu0 0.0
    %1609 = vmatpush1.msra.mxu0 0.0
    %1610 = vmatprep.subr.mxu0 0.0
    %1611 = vmatpush1.msra.mxu0 0.0
    %1612 = vmatprep.subr.mxu0 0.0
    %1613 = vmatpush1.msra.mxu0 0.0
    %1614 = vmatprep.subr.mxu0 0.0
    %1615 = vmatpush1.msra.mxu0 0.0
    %1616 = vmatprep.subr.mxu0 0.0
    %1617 = vmatpush1.msra.mxu0 0.0
    %1618 = vmatprep.subr.mxu0 0.0
    %1619 = vmatpush1.msra.mxu0 0.0
    %1620 = vmatprep.subr.mxu0 0.0
    %1621 = vmatpush1.msra.mxu0 0.0
    %1622 = vmatprep.subr.mxu0 0.0
    %1623 = vmatpush1.msra.mxu0 0.0
    %1624 = vmatprep.subr.mxu0 0.0
    %1625 = vmatpush1.msra.mxu0 0.0
    %1626 = vmatprep.subr.mxu0 0.0
    %1627 = vmatpush1.msra.mxu0 0.0
    %1628 = vmatprep.subr.mxu0 0.0
    %1629 = vmatpush1.msra.mxu0 0.0
    %1630 = vmatprep.subr.mxu0 0.0
    %1631 = vmatpush1.msra.mxu0 0.0
    %1632 = vmatprep.subr.mxu0 0.0
    %1633 = vmatpush1.msra.mxu0 0.0
    %1634 = vmatprep.subr.mxu0 0.0
    %1635 = vmatpush1.msra.mxu0 0.0
    %1636 = vmatprep.subr.mxu0 0.0
    %1637 = vmatpush1.msra.mxu0 0.0
    %1638 = vmatprep.subr.mxu0 0.0
    %1639 = vmatpush1.msra.mxu0 0.0
    %1640 = vmatprep.subr.mxu0 0.0
    %1641 = vmatpush1.msra.mxu0 0.0
    %1642 = vmatprep.subr.mxu0 0.0
    %1643 = vmatpush1.msra.mxu0 0.0
    %1644 = vmatprep.subr.mxu0 0.0
    %1645 = vmatpush1.msra.mxu0 0.0
    %1646 = vmatprep.subr.mxu0 0.0
    %1647 = vmatpush1.msra.mxu0 0.0
    %1648 = vmatprep.mubr.f32.mxu0 0.0
    %1649 = vmatmul.mubr.f32.gmra.mrb[0].mxu0 %v1255
    %v1650 = vpop.f32.mrb[0].mxu0
    %v1651 = vadd.f32 %v1581, %v1650
    %v1652 = vpop.f32.mrb[0].mxu0
    %1653 = vdwg.mxu0
    %v1654 = vlaneseq
    %v1655 = vshrl.u32 %v1654, 7
    %v1656 = vsub.s32 0, %v1655
    %v1657 = vrot.slane %v1510, %v1656
    %v1658 = vadd.f32 %v1651, %v1657
    %s1659 = scalar_lea.vmem %s5, 24
    %v1660 = vld [vmem:[%s1659] sm:$0xff]
    %v1661 = vld [vmem:[%s6 + $0x4] sm:$0x1]
    %vm1662 = vcmp.ge.f32.partialorder %v1658, 0.0
    %v1663 = vmul.f32 %v1658, 0.01
    %v1664 = vsel %vm1662, %v1658, %v1663
    %v1665 = vlaneseq
    %v1666 = vshrl.u32 %v1665, 7
    %v1667 = vsub.s32 0, %v1666
    %v1668 = vrot.slane %v1661, %v1667
    %v1670 = vsel %vm135, %v1664, 0
    %1672 = vmatprep.subr.mxu0 0.0
    %1673 = vmatpush1.msra.mxu0 %v1660
    %1674 = vmatprep.subr.mxu0 0.0
    %1675 = vmatpush1.msra.mxu0 0.0
    %1676 = vmatprep.subr.mxu0 0.0
    %1677 = vmatpush1.msra.mxu0 0.0
    %1678 = vmatprep.subr.mxu0 0.0
    %1679 = vmatpush1.msra.mxu0 0.0
    %1680 = vmatprep.subr.mxu0 0.0
    %1681 = vmatpush1.msra.mxu0 0.0
    %1682 = vmatprep.subr.mxu0 0.0
    %1683 = vmatpush1.msra.mxu0 0.0
    %1684 = vmatprep.subr.mxu0 0.0
    %1685 = vmatpush1.msra.mxu0 0.0
    %1686 = vmatprep.subr.mxu0 0.0
    %1687 = vmatpush1.msra.mxu0 0.0
    %1688 = vmatprep.subr.mxu0 0.0
    %1689 = vmatpush1.msra.mxu0 0.0
    %1690 = vmatprep.subr.mxu0 0.0
    %1691 = vmatpush1.msra.mxu0 0.0
    %1692 = vmatprep.subr.mxu0 0.0
    %1693 = vmatpush1.msra.mxu0 0.0
    %1694 = vmatprep.subr.mxu0 0.0
    %1695 = vmatpush1.msra.mxu0 0.0
    %1696 = vmatprep.subr.mxu0 0.0
    %1697 = vmatpush1.msra.mxu0 0.0
    %1698 = vmatprep.subr.mxu0 0.0
    %1699 = vmatpush1.msra.mxu0 0.0
    %1700 = vmatprep.subr.mxu0 0.0
    %1701 = vmatpush1.msra.mxu0 0.0
    %1702 = vmatprep.subr.mxu0 0.0
    %1703 = vmatpush1.msra.mxu0 0.0
    %1704 = vmatprep.subr.mxu0 0.0
    %1705 = vmatpush1.msra.mxu0 0.0
    %1706 = vmatprep.subr.mxu0 0.0
    %1707 = vmatpush1.msra.mxu0 0.0
    %1708 = vmatprep.subr.mxu0 0.0
    %1709 = vmatpush1.msra.mxu0 0.0
    %1710 = vmatprep.subr.mxu0 0.0
    %1711 = vmatpush1.msra.mxu0 0.0
    %1712 = vmatprep.subr.mxu0 0.0
    %1713 = vmatpush1.msra.mxu0 0.0
    %1714 = vmatprep.subr.mxu0 0.0
    %1715 = vmatpush1.msra.mxu0 0.0
    %1716 = vmatprep.subr.mxu0 0.0
    %1717 = vmatpush1.msra.mxu0 0.0
    %1718 = vmatprep.subr.mxu0 0.0
    %1719 = vmatpush1.msra.mxu0 0.0
    %1720 = vmatprep.subr.mxu0 0.0
    %1721 = vmatpush1.msra.mxu0 0.0
    %1722 = vmatprep.subr.mxu0 0.0
    %1723 = vmatpush1.msra.mxu0 0.0
    %1724 = vmatprep.subr.mxu0 0.0
    %1725 = vmatpush1.msra.mxu0 0.0
    %1726 = vmatprep.subr.mxu0 0.0
    %1727 = vmatpush1.msra.mxu0 0.0
    %1728 = vmatprep.subr.mxu0 0.0
    %1729 = vmatpush1.msra.mxu0 0.0
    %1730 = vmatprep.subr.mxu0 0.0
    %1731 = vmatpush1.msra.mxu0 0.0
    %1732 = vmatprep.subr.mxu0 0.0
    %1733 = vmatpush1.msra.mxu0 0.0
    %1734 = vmatprep.subr.mxu0 0.0
    %1735 = vmatpush1.msra.mxu0 0.0
    %1736 = vmatprep.mubr.f32.mxu0 0.0
    %1737 = vmatmul.mubr.f32.gmra.mrb[0].mxu0 %v1670
    %v1738 = vpop.f32.mrb[0].mxu0
    %v1739 = vadd.f32 %v1668, %v1738
    %v1740 = vpop.f32.mrb[0].mxu0
    %1741 = vdwg.mxu0
    %v1742 = vld [vmem:[%s9] sm:$0xff]
    %v1743 = vld [vmem:[#allocation2] sm:$0x1]
    %v1745 = vlaneseq
    %v1746 = vshrl.u32 %v1745, 7
    %v1747 = vsub.s32 0, %v1746
    %v1748 = vrot.slane %v1743, %v1747
    %v1751 = vsel %vm135, %v1739, 0
    %1753 = vmatprep.subr.mxu0 0.0
    %1754 = vmatpush1.msra.mxu0 %v1742
    %1755 = vmatprep.subr.mxu0 0.0
    %1756 = vmatpush1.msra.mxu0 0.0
    %1757 = vmatprep.subr.mxu0 0.0
    %1758 = vmatpush1.msra.mxu0 0.0
    %1759 = vmatprep.subr.mxu0 0.0
    %1760 = vmatpush1.msra.mxu0 0.0
    %1761 = vmatprep.subr.mxu0 0.0
    %1762 = vmatpush1.msra.mxu0 0.0
    %1763 = vmatprep.subr.mxu0 0.0
    %1764 = vmatpush1.msra.mxu0 0.0
    %1765 = vmatprep.subr.mxu0 0.0
    %1766 = vmatpush1.msra.mxu0 0.0
    %1767 = vmatprep.subr.mxu0 0.0
    %1768 = vmatpush1.msra.mxu0 0.0
    %1769 = vmatprep.subr.mxu0 0.0
    %1770 = vmatpush1.msra.mxu0 0.0
    %1771 = vmatprep.subr.mxu0 0.0
    %1772 = vmatpush1.msra.mxu0 0.0
    %1773 = vmatprep.subr.mxu0 0.0
    %1774 = vmatpush1.msra.mxu0 0.0
    %1775 = vmatprep.subr.mxu0 0.0
    %1776 = vmatpush1.msra.mxu0 0.0
    %1777 = vmatprep.subr.mxu0 0.0
    %1778 = vmatpush1.msra.mxu0 0.0
    %1779 = vmatprep.subr.mxu0 0.0
    %1780 = vmatpush1.msra.mxu0 0.0
    %1781 = vmatprep.subr.mxu0 0.0
    %1782 = vmatpush1.msra.mxu0 0.0
    %1783 = vmatprep.subr.mxu0 0.0
    %1784 = vmatpush1.msra.mxu0 0.0
    %1785 = vmatprep.subr.mxu0 0.0
    %1786 = vmatpush1.msra.mxu0 0.0
    %1787 = vmatprep.subr.mxu0 0.0
    %1788 = vmatpush1.msra.mxu0 0.0
    %1789 = vmatprep.subr.mxu0 0.0
    %1790 = vmatpush1.msra.mxu0 0.0
    %1791 = vmatprep.subr.mxu0 0.0
    %1792 = vmatpush1.msra.mxu0 0.0
    %1793 = vmatprep.subr.mxu0 0.0
    %1794 = vmatpush1.msra.mxu0 0.0
    %1795 = vmatprep.subr.mxu0 0.0
    %1796 = vmatpush1.msra.mxu0 0.0
    %1797 = vmatprep.subr.mxu0 0.0
    %1798 = vmatpush1.msra.mxu0 0.0
    %1799 = vmatprep.subr.mxu0 0.0
    %1800 = vmatpush1.msra.mxu0 0.0
    %1801 = vmatprep.subr.mxu0 0.0
    %1802 = vmatpush1.msra.mxu0 0.0
    %1803 = vmatprep.subr.mxu0 0.0
    %1804 = vmatpush1.msra.mxu0 0.0
    %1805 = vmatprep.subr.mxu0 0.0
    %1806 = vmatpush1.msra.mxu0 0.0
    %1807 = vmatprep.subr.mxu0 0.0
    %1808 = vmatpush1.msra.mxu0 0.0
    %1809 = vmatprep.subr.mxu0 0.0
    %1810 = vmatpush1.msra.mxu0 0.0
    %1811 = vmatprep.subr.mxu0 0.0
    %1812 = vmatpush1.msra.mxu0 0.0
    %1813 = vmatprep.subr.mxu0 0.0
    %1814 = vmatpush1.msra.mxu0 0.0
    %1815 = vmatprep.subr.mxu0 0.0
    %1816 = vmatpush1.msra.mxu0 0.0
    %1817 = vmatprep.mubr.f32.mxu0 0.0
    %1818 = vmatmul.mubr.f32.gmra.mrb[0].mxu0 %v1751
    %v1819 = vpop.f32.mrb[0].mxu0
    %v1820 = vadd.f32 %v1748, %v1819
    %v1821 = vpop.f32.mrb[0].mxu0
    %1822 = vdwg.mxu0
    %v1823 = vmax.f32 %v1820, 0.0
    %v1824 = vsub.f32 0.0, %v1823
    %v1825 = vmul.f32 %v1824, 1.442695
    %v1826 = vpow.pop %v1825
    %v1827 = vsub.f32 %v1820, %v1823
    %v1828 = vmul.f32 %v1827, 1.442695
    %v1829 = vpow.pop %v1828
    %v1830 = vadd.f32 %v1826, %v1829
    %v1831 = vlog2.pop %v1830
    %v1832 = vmul.f32 %v1831, 0.6931472
    %v1833 = vadd.f32 %v1823, %v1832
    %vm1834 = vcmp.eq.s32.totalorder %v972, 0
    %v1835 = vsub.f32 0.0, %v1833
    %vm1836 = vcmp.eq.s32.totalorder %v972, 1
    %v1837 = vsub.f32 %v1820, %v1833
    %1839 = vset.pattern.permute.xlu0 0
    %1840 = vperm.xlu0 %1839, %v1837
    %v1841 = vpop.permute.xlu0 %1840
    %v1843 = vsel %vm1836, %v1841, 0.0
    %1845 = vset.pattern.permute.xlu0 0
    %1846 = vperm.xlu0 %1845, %v1835
    %v1847 = vpop.permute.xlu0 %1846
    %v1849 = vsel %vm1834, %v1847, %v1843
    %1850 = vst [vmem:[#allocation3] sm:$0xff] %v1849
    // Predicated region
    $region46: #{tpu_custom_call.1} parent=1 // pred_check
      _
    $region47: #{tpu_custom_call.1} parent=1 // pred_check_branch
      %1852 = sbr.rel (0) target = $region49
    $region48: #{tpu_custom_call.1} parent=1 // pred_region
      %s1854 = ssub.s32 128, 128
      %1855 = vsyncadd [#allocation4], %s1854
      %s1857 = sshll.u32 [#allocation3], 4
      %s1858 = int_to_ptr.vmem [resolvable:$true] %s1857
      %1860 = dma.vmem_to_hbm [thread:$0]  %s1858, 128, %s11, [#allocation4]
    $region49: #{tpu_custom_call.1} parent=1 // pred_fallthru
      _
    // Predicated region
    $region50: #{tpu_custom_call.1} parent=1 // pred_check
      _
    $region51: #{tpu_custom_call.1} parent=1 // pred_check_branch
      %1862 = sbr.rel (0) target = $region53
    $region52: #{tpu_custom_call.1} parent=1 // pred_region
      %1863 = dma.done [#allocation4], 128
    $region53: #{tpu_custom_call.1} parent=1 // pred_fallthru
      _
    %1864 = vsyncpa [#allocation4], 1

</llo_original>
